<compile_context>
chip_gen: v5e
topology: v5e:2x2
jax: 0.10.0
libtpu: 0.0.40
codegen_flags: <defaults>
</compile_context>

<pallas_src>
import functools

import numpy as np
import jax
import jax.numpy as jnp
from jax import lax
from jax.experimental import pallas as pl
from jax.experimental.pallas import tpu as pltpu


# 3x3 tap offsets in (dh, dw) order; tap index t == kh*3 + kw of the PyTorch kernel.
_TAPS = tuple((dh, dw) for dh in (-1, 0, 1) for dw in (-1, 0, 1))


def _resblock_kernel(x1_ref, x2_ref, w1_ref, b1_ref, w2_ref, b2_ref,
                     o1_ref, o2_ref, ext_ref, *, H, W, C, off):
    """Fused conv3x3 -> LeakyReLU(0.01) -> conv3x3 for one image of x1 and one of x2.

    x*_ref : (1, C, HW)        image, channels on sublanes, H*W on lanes
    w*_ref : (9, 2C, 2C)       per-tap block-diagonal weights (x1/x2 channel stack)
    b*_ref : (2C, 1)           bias, duplicated for the two channel stacks
    o*_ref : (1, C, HW)        outputs (lane-dense stores)
    ext_ref: (2C, 2*off + HW)  scratch: both images with a lane-aligned zero halo
    """
    HW = H * W

    # Zero only the halos; the interior is fully overwritten below (both convs and
    # both images see correct SAME zero padding).  Not gated on program_id.
    ext_ref[:, :off] = jnp.zeros((2 * C, off), jnp.float32)
    ext_ref[:, off + HW:] = jnp.zeros((2 * C, off), jnp.float32)

    # In-kernel SAME-padding masks: only the lateral (dw != 0) wrap needs masking;
    # the zero halo already handles dh out-of-range.  Computed once per step.
    wpos = lax.broadcasted_iota(jnp.int32, (2 * C, HW), 1) % W
    mask_l = (wpos >= 1).astype(jnp.float32)        # valid lanes for taps with dw = -1
    mask_r = (wpos <= W - 2).astype(jnp.float32)    # valid lanes for taps with dw = +1

    def conv3x3(w_ref, b):
        # Accumulate 9 small MXU matmuls (2C,2C)@(2C,HW) directly from the haloed
        # buffer into an f32 register accumulator -- no im2col materialization.
        acc = jnp.zeros((2 * C, HW), jnp.float32)
        for t, (dh, dw) in enumerate(_TAPS):
            s = dh * W + dw
            tap = ext_ref[:, off + s:off + s + HW]
            if dw == -1:
                tap = tap * mask_l
            elif dw == 1:
                tap = tap * mask_r
            acc = acc + jnp.dot(w_ref[t], tap, preferred_element_type=jnp.float32)
        return acc + b

    # Load both images into the sublane-stacked, haloed buffer (aligned interior).
    ext_ref[:C, off:off + HW] = x1_ref[0].astype(jnp.float32)
    ext_ref[C:, off:off + HW] = x2_ref[0].astype(jnp.float32)

    y = conv3x3(w1_ref, b1_ref[...])
    y = jnp.where(y >= 0.0, y, 0.01 * y)            # LeakyReLU(0.01)
    ext_ref[:, off:off + HW] = y                     # full-width aligned store; halos stay zero
    y = conv3x3(w2_ref, b2_ref[...])

    o1_ref[0] = y[:C].astype(o1_ref.dtype)
    o2_ref[0] = y[C:].astype(o2_ref.dtype)


def _to_tap_blockdiag(w_oihw):
    """OIHW (C, C, 3, 3) -> (9, 2C, 2C): per-tap block-diag [[W_t, 0], [0, W_t]]."""
    c = w_oihw.shape[0]
    wt = jnp.transpose(w_oihw, (2, 3, 0, 1)).reshape(9, c, c)   # t = kh*3 + kw
    z = jnp.zeros_like(wt)
    top = jnp.concatenate([wt, z], axis=2)
    bot = jnp.concatenate([z, wt], axis=2)
    return jnp.concatenate([top, bot], axis=1)


def _round_up(x, m):
    return (x + m - 1) // m * m


@jax.jit
def resblock_forward(x1, x2, params):
    """(y1, y2) = (body(x1), body(x2)); body = conv3x3 -> LeakyReLU(0.01) -> conv3x3."""
    w1_oihw, b1, w2_oihw, b2 = params
    N, C, H, W = x1.shape
    HW = H * W
    off = _round_up(W + 1, 128)            # lane-aligned halo offset
    ext_len = HW + 2 * off

    # Pure views of contiguous NCHW data -> lane axis is H*W (dense stores).
    x1f = x1.reshape(N, C, HW)
    x2f = x2.reshape(N, C, HW)
    w1bd = _to_tap_blockdiag(w1_oihw)
    w2bd = _to_tap_blockdiag(w2_oihw)
    b1c = jnp.concatenate([b1, b1]).reshape(2 * C, 1)
    b2c = jnp.concatenate([b2, b2]).reshape(2 * C, 1)

    kernel = functools.partial(_resblock_kernel, H=H, W=W, C=C, off=off)
    flops = N * 2 * 2 * (2 * 9 * C * C * HW)                  # 2 inputs x 2 convs
    bytes_accessed = 4 * (4 * N * C * HW + 2 * (9 * 4 * C * C + 2 * C))

    img_spec = pl.BlockSpec((1, C, HW), lambda n: (n, 0, 0))
    y1f, y2f = pl.pallas_call(
        kernel,
        out_shape=(jax.ShapeDtypeStruct((N, C, HW), x1.dtype),
                   jax.ShapeDtypeStruct((N, C, HW), x2.dtype)),
        grid_spec=pltpu.PrefetchScalarGridSpec(
            num_scalar_prefetch=0,
            grid=(N,),
            in_specs=[
                img_spec,                                              # x1
                img_spec,                                              # x2
                pl.BlockSpec((9, 2 * C, 2 * C), lambda n: (0, 0, 0)),  # w1 (resident)
                pl.BlockSpec((2 * C, 1), lambda n: (0, 0)),            # b1
                pl.BlockSpec((9, 2 * C, 2 * C), lambda n: (0, 0, 0)),  # w2
                pl.BlockSpec((2 * C, 1), lambda n: (0, 0)),            # b2
            ],
            out_specs=(img_spec, img_spec),
            scratch_shapes=[
                pltpu.VMEM((2 * C, ext_len), jnp.float32),   # zero-haloed image stack
            ],
        ),
        compiler_params=pltpu.CompilerParams(
            dimension_semantics=("parallel",),
            # Plenty for these tiles; for production H-tiling raise toward
            # ~56 MiB on v7x (64 MiB VMEM) / ~96 MiB on v6e (128 MiB VMEM).
            vmem_limit_bytes=32 * 1024 * 1024),
        cost_estimate=pl.CostEstimate(flops=flops, transcendentals=0,
                                      bytes_accessed=bytes_accessed),
    )(x1f, x2f, w1bd, b1c, w2bd, b2c)

    return y1f.reshape(N, C, H, W), y2f.reshape(N, C, H, W)


def init_params(key, out_ch):
    """PyTorch-style Conv2d init; weights kept in OIHW (Cout, Cin, 3, 3)."""
    k1, k2, k3, k4 = jax.random.split(key, 4)
    fan_in = out_ch * 3 * 3
    bound = 1.0 / np.sqrt(fan_in)
    w1 = jax.random.uniform(k1, (out_ch, out_ch, 3, 3), jnp.float32, -bound, bound)
    b1 = jax.random.uniform(k2, (out_ch,), jnp.float32, -bound, bound)
    w2 = jax.random.uniform(k3, (out_ch, out_ch, 3, 3), jnp.float32, -bound, bound)
    b2 = jax.random.uniform(k4, (out_ch,), jnp.float32, -bound, bound)
    return w1, b1, w2, b2


def _reference_body(x_nchw, params):
    """Plain-JAX reference (lax.conv) for correctness checking."""
    w1, b1, w2, b2 = params
    dn = ("NCHW", "OIHW", "NCHW")
    y = jax.lax.conv_general_dilated(x_nchw, w1, (1, 1), "SAME",
                                     dimension_numbers=dn)
    y = y + b1.reshape(1, -1, 1, 1)
    y = jnp.where(y >= 0.0, y, 0.01 * y)
    y = jax.lax.conv_general_dilated(y, w2, (1, 1), "SAME",
                                     dimension_numbers=dn)
    return y + b2.reshape(1, -1, 1, 1)


if __name__ == "__main__":
    key = jax.random.PRNGKey(0)
    k_x1, k_x2, k_p = jax.random.split(key, 3)

    N, C, H, W = 2, 4, 16, 16
    x1 = jax.random.normal(k_x1, (N, C, H, W), jnp.float32)
    x2 = jax.random.normal(k_x2, (N, C, H, W), jnp.float32)
    params = init_params(k_p, C)

    y1, y2 = resblock_forward(x1, x2, params)
    jax.block_until_ready((y1, y2))

    ref1 = _reference_body(x1, params)
    ref2 = _reference_body(x2, params)
    assert jnp.allclose(y1, ref1, atol=1e-4, rtol=1e-4), "x1 mismatch"
    assert jnp.allclose(y2, ref2, atol=1e-4, rtol=1e-4), "x2 mismatch"

    print("KERNEL_OK")
</pallas_src>

<mosaic_0001>
module attributes {stable_mosaic.version = 11 : i64} {
  func.func @_resblock_kernel(%arg0: i32, %arg1: memref<1x4x256xf32, #tpu.memory_space<vmem>>, %arg2: memref<1x4x256xf32, #tpu.memory_space<vmem>>, %arg3: memref<9x8x8xf32, #tpu.memory_space<vmem>>, %arg4: memref<8x1xf32, #tpu.memory_space<vmem>>, %arg5: memref<9x8x8xf32, #tpu.memory_space<vmem>>, %arg6: memref<8x1xf32, #tpu.memory_space<vmem>>, %arg7: memref<1x4x256xf32, #tpu.memory_space<vmem>>, %arg8: memref<1x4x256xf32, #tpu.memory_space<vmem>>, %arg9: memref<8x512xf32, #tpu.memory_space<vmem>>) attributes {dimension_semantics = [#tpu.dimension_semantics<parallel>], iteration_bounds = array<i64: 2>, scalar_prefetch = 0 : i64, scratch_operands = 1 : i64, tpu.core_type = #tpu.core_type<tc>, window_params = [{transform_indices = @transform_0, window_bounds = array<i64: 1, 4, 256>}, {transform_indices = @transform_1, window_bounds = array<i64: 1, 4, 256>}, {pipeline_mode = #tpu.pipeline_mode<synchronous>, transform_indices = @transform_2, window_bounds = array<i64: 9, 8, 8>}, {pipeline_mode = #tpu.pipeline_mode<synchronous>, transform_indices = @transform_3, window_bounds = array<i64: 8, 1>}, {pipeline_mode = #tpu.pipeline_mode<synchronous>, transform_indices = @transform_4, window_bounds = array<i64: 9, 8, 8>}, {pipeline_mode = #tpu.pipeline_mode<synchronous>, transform_indices = @transform_5, window_bounds = array<i64: 8, 1>}, {transform_indices = @transform_6, window_bounds = array<i64: 1, 4, 256>}, {transform_indices = @transform_7, window_bounds = array<i64: 1, 4, 256>}]} {
    %cst = arith.constant 0.000000e+00 : f32
    %0 = vector.broadcast %cst : f32 to vector<8x128xf32>
    %c0 = arith.constant 0 : index
    %c0_0 = arith.constant 0 : index
    %1 = vector.load %arg9[%c0, %c0_0] : memref<8x512xf32, #tpu.memory_space<vmem>>, vector<8x128xf32>
    tpu.vector_store %arg9[%c0, %c0_0], %0 {strides = array<i32>} : memref<8x512xf32, #tpu.memory_space<vmem>>, vector<8x128xf32>,
    %cst_1 = arith.constant 0.000000e+00 : f32
    %2 = vector.broadcast %cst_1 : f32 to vector<8x128xf32>
    %c0_2 = arith.constant 0 : index
    %c384 = arith.constant 384 : index
    %3 = vector.load %arg9[%c0_2, %c384] : memref<8x512xf32, #tpu.memory_space<vmem>>, vector<8x128xf32>
    tpu.vector_store %arg9[%c0_2, %c384], %2 {strides = array<i32>} : memref<8x512xf32, #tpu.memory_space<vmem>>, vector<8x128xf32>,
    %4 = tpu.iota {dimensions = array<i32: 1>} : vector<8x256xi32>
    %c16_i32 = arith.constant 16 : i32
    %c0_i32 = arith.constant 0 : i32
    %5 = arith.cmpi eq, %c16_i32, %c0_i32 : i32
    %c1_i32 = arith.constant 1 : i32
    %6 = arith.select %5, %c1_i32, %c16_i32 : i32
    %7 = vector.broadcast %6 : i32 to vector<8x256xi32>
    %8 = arith.remsi %4, %7 : vector<8x256xi32>
    %c0_i32_3 = arith.constant 0 : i32
    %9 = vector.broadcast %c0_i32_3 : i32 to vector<8x256xi32>
    %10 = arith.cmpi ne, %8, %9 : vector<8x256xi32>
    %c0_i32_4 = arith.constant 0 : i32
    %11 = vector.broadcast %c0_i32_4 : i32 to vector<8x256xi32>
    %12 = arith.cmpi slt, %8, %11 : vector<8x256xi32>
    %c0_i32_5 = arith.constant 0 : i32
    %13 = arith.cmpi slt, %6, %c0_i32_5 : i32
    %14 = vector.broadcast %13 : i1 to vector<8x256xi1>
    %15 = vector.broadcast %14 : vector<8x256xi1> to vector<8x256xi1>
    %16 = arith.xori %12, %15 : vector<8x256xi1>
    %17 = arith.andi %16, %10 : vector<8x256xi1>
    %18 = vector.broadcast %6 : i32 to vector<8x256xi32>
    %19 = arith.addi %8, %18 : vector<8x256xi32>
    %20 = arith.select %17, %19, %8 : vector<8x256xi1>, vector<8x256xi32>
    %c1_i32_6 = arith.constant 1 : i32
    %21 = vector.broadcast %c1_i32_6 : i32 to vector<8x256xi32>
    %22 = arith.cmpi sge, %20, %21 : vector<8x256xi32>
    %23 = arith.extui %22 : vector<8x256xi1> to vector<8x256xi32>
    %24 = arith.sitofp %23 : vector<8x256xi32> to vector<8x256xf32>
    %c14_i32 = arith.constant 14 : i32
    %25 = vector.broadcast %c14_i32 : i32 to vector<8x256xi32>
    %26 = arith.cmpi sle, %20, %25 : vector<8x256xi32>
    %27 = arith.extui %26 : vector<8x256xi1> to vector<8x256xi32>
    %28 = arith.sitofp %27 : vector<8x256xi32> to vector<8x256xf32>
    %c0_7 = arith.constant 0 : index
    %c0_8 = arith.constant 0 : index
    %c0_9 = arith.constant 0 : index
    %29 = vector.load %arg1[%c0_7, %c0_8, %c0_9] : memref<1x4x256xf32, #tpu.memory_space<vmem>>, vector<1x4x256xf32>
    %30 = vector.shape_cast %29 : vector<1x4x256xf32> to vector<4x256xf32>
    %c0_10 = arith.constant 0 : index
    %c128 = arith.constant 128 : index
    %31 = vector.load %arg9[%c0_10, %c128] : memref<8x512xf32, #tpu.memory_space<vmem>>, vector<4x256xf32>
    tpu.vector_store %arg9[%c0_10, %c128], %30 {strides = array<i32>} : memref<8x512xf32, #tpu.memory_space<vmem>>, vector<4x256xf32>,
    %c0_11 = arith.constant 0 : index
    %c0_12 = arith.constant 0 : index
    %c0_13 = arith.constant 0 : index
    %32 = vector.load %arg2[%c0_11, %c0_12, %c0_13] : memref<1x4x256xf32, #tpu.memory_space<vmem>>, vector<1x4x256xf32>
    %33 = vector.shape_cast %32 : vector<1x4x256xf32> to vector<4x256xf32>
    %c4 = arith.constant 4 : index
    %c128_14 = arith.constant 128 : index
    %34 = vector.load %arg9[%c4, %c128_14] : memref<8x512xf32, #tpu.memory_space<vmem>>, vector<4x256xf32>
    tpu.vector_store %arg9[%c4, %c128_14], %33 {strides = array<i32>} : memref<8x512xf32, #tpu.memory_space<vmem>>, vector<4x256xf32>,
    %c0_15 = arith.constant 0 : index
    %c0_16 = arith.constant 0 : index
    %35 = vector.load %arg4[%c0_15, %c0_16] : memref<8x1xf32, #tpu.memory_space<vmem>>, vector<8x1xf32>
    %cst_17 = arith.constant 0.000000e+00 : f32
    %36 = vector.broadcast %cst_17 : f32 to vector<8x256xf32>
    %c0_18 = arith.constant 0 : index
    %c111 = arith.constant 111 : index
    %37 = vector.load %arg9[%c0_18, %c111] : memref<8x512xf32, #tpu.memory_space<vmem>>, vector<8x256xf32>
    %38 = arith.mulf %37, %24 : vector<8x256xf32>
    %c0_19 = arith.constant 0 : index
    %c0_20 = arith.constant 0 : index
    %c0_21 = arith.constant 0 : index
    %39 = vector.load %arg3[%c0_19, %c0_20, %c0_21] : memref<9x8x8xf32, #tpu.memory_space<vmem>>, vector<1x8x8xf32>
    %40 = vector.shape_cast %39 : vector<1x8x8xf32> to vector<8x8xf32>
    %cst_22 = arith.constant dense<0.000000e+00> : vector<8x256xf32>
    %41 = tpu.matmul %40, %38, %cst_22 {dimension_numbers = #tpu.dot_dimension_numbers<[1], [0], [0], [1], [0, 0, 1, 1], [], []>} : vector<8x8xf32>, vector<8x256xf32>, vector<8x256xf32> -> vector<8x256xf32>
    %42 = arith.addf %36, %41 : vector<8x256xf32>
    %c0_23 = arith.constant 0 : index
    %c112 = arith.constant 112 : index
    %43 = vector.load %arg9[%c0_23, %c112] : memref<8x512xf32, #tpu.memory_space<vmem>>, vector<8x256xf32>
    %c1 = arith.constant 1 : index
    %c0_24 = arith.constant 0 : index
    %c0_25 = arith.constant 0 : index
    %44 = vector.load %arg3[%c1, %c0_24, %c0_25] : memref<9x8x8xf32, #tpu.memory_space<vmem>>, vector<1x8x8xf32>
    %45 = vector.shape_cast %44 : vector<1x8x8xf32> to vector<8x8xf32>
    %cst_26 = arith.constant dense<0.000000e+00> : vector<8x256xf32>
    %46 = tpu.matmul %45, %43, %cst_26 {dimension_numbers = #tpu.dot_dimension_numbers<[1], [0], [0], [1], [0, 0, 1, 1], [], []>} : vector<8x8xf32>, vector<8x256xf32>, vector<8x256xf32> -> vector<8x256xf32>
    %47 = arith.addf %42, %46 : vector<8x256xf32>
    %c0_27 = arith.constant 0 : index
    %c113 = arith.constant 113 : index
    %48 = vector.load %arg9[%c0_27, %c113] : memref<8x512xf32, #tpu.memory_space<vmem>>, vector<8x256xf32>
    %49 = arith.mulf %48, %28 : vector<8x256xf32>
    %c2 = arith.constant 2 : index
    %c0_28 = arith.constant 0 : index
    %c0_29 = arith.constant 0 : index
    %50 = vector.load %arg3[%c2, %c0_28, %c0_29] : memref<9x8x8xf32, #tpu.memory_space<vmem>>, vector<1x8x8xf32>
    %51 = vector.shape_cast %50 : vector<1x8x8xf32> to vector<8x8xf32>
    %cst_30 = arith.constant dense<0.000000e+00> : vector<8x256xf32>
    %52 = tpu.matmul %51, %49, %cst_30 {dimension_numbers = #tpu.dot_dimension_numbers<[1], [0], [0], [1], [0, 0, 1, 1], [], []>} : vector<8x8xf32>, vector<8x256xf32>, vector<8x256xf32> -> vector<8x256xf32>
    %53 = arith.addf %47, %52 : vector<8x256xf32>
    %c0_31 = arith.constant 0 : index
    %c127 = arith.constant 127 : index
    %54 = vector.load %arg9[%c0_31, %c127] : memref<8x512xf32, #tpu.memory_space<vmem>>, vector<8x256xf32>
    %55 = arith.mulf %54, %24 : vector<8x256xf32>
    %c3 = arith.constant 3 : index
    %c0_32 = arith.constant 0 : index
    %c0_33 = arith.constant 0 : index
    %56 = vector.load %arg3[%c3, %c0_32, %c0_33] : memref<9x8x8xf32, #tpu.memory_space<vmem>>, vector<1x8x8xf32>
    %57 = vector.shape_cast %56 : vector<1x8x8xf32> to vector<8x8xf32>
    %cst_34 = arith.constant dense<0.000000e+00> : vector<8x256xf32>
    %58 = tpu.matmul %57, %55, %cst_34 {dimension_numbers = #tpu.dot_dimension_numbers<[1], [0], [0], [1], [0, 0, 1, 1], [], []>} : vector<8x8xf32>, vector<8x256xf32>, vector<8x256xf32> -> vector<8x256xf32>
    %59 = arith.addf %53, %58 : vector<8x256xf32>
    %c0_35 = arith.constant 0 : index
    %c128_36 = arith.constant 128 : index
    %60 = vector.load %arg9[%c0_35, %c128_36] : memref<8x512xf32, #tpu.memory_space<vmem>>, vector<8x256xf32>
    %c4_37 = arith.constant 4 : index
    %c0_38 = arith.constant 0 : index
    %c0_39 = arith.constant 0 : index
    %61 = vector.load %arg3[%c4_37, %c0_38, %c0_39] : memref<9x8x8xf32, #tpu.memory_space<vmem>>, vector<1x8x8xf32>
    %62 = vector.shape_cast %61 : vector<1x8x8xf32> to vector<8x8xf32>
    %cst_40 = arith.constant dense<0.000000e+00> : vector<8x256xf32>
    %63 = tpu.matmul %62, %60, %cst_40 {dimension_numbers = #tpu.dot_dimension_numbers<[1], [0], [0], [1], [0, 0, 1, 1], [], []>} : vector<8x8xf32>, vector<8x256xf32>, vector<8x256xf32> -> vector<8x256xf32>
    %64 = arith.addf %59, %63 : vector<8x256xf32>
    %c0_41 = arith.constant 0 : index
    %c129 = arith.constant 129 : index
    %65 = vector.load %arg9[%c0_41, %c129] : memref<8x512xf32, #tpu.memory_space<vmem>>, vector<8x256xf32>
    %66 = arith.mulf %65, %28 : vector<8x256xf32>
    %c5 = arith.constant 5 : index
    %c0_42 = arith.constant 0 : index
    %c0_43 = arith.constant 0 : index
    %67 = vector.load %arg3[%c5, %c0_42, %c0_43] : memref<9x8x8xf32, #tpu.memory_space<vmem>>, vector<1x8x8xf32>
    %68 = vector.shape_cast %67 : vector<1x8x8xf32> to vector<8x8xf32>
    %cst_44 = arith.constant dense<0.000000e+00> : vector<8x256xf32>
    %69 = tpu.matmul %68, %66, %cst_44 {dimension_numbers = #tpu.dot_dimension_numbers<[1], [0], [0], [1], [0, 0, 1, 1], [], []>} : vector<8x8xf32>, vector<8x256xf32>, vector<8x256xf32> -> vector<8x256xf32>
    %70 = arith.addf %64, %69 : vector<8x256xf32>
    %c0_45 = arith.constant 0 : index
    %c143 = arith.constant 143 : index
    %71 = vector.load %arg9[%c0_45, %c143] : memref<8x512xf32, #tpu.memory_space<vmem>>, vector<8x256xf32>
    %72 = arith.mulf %71, %24 : vector<8x256xf32>
    %c6 = arith.constant 6 : index
    %c0_46 = arith.constant 0 : index
    %c0_47 = arith.constant 0 : index
    %73 = vector.load %arg3[%c6, %c0_46, %c0_47] : memref<9x8x8xf32, #tpu.memory_space<vmem>>, vector<1x8x8xf32>
    %74 = vector.shape_cast %73 : vector<1x8x8xf32> to vector<8x8xf32>
    %cst_48 = arith.constant dense<0.000000e+00> : vector<8x256xf32>
    %75 = tpu.matmul %74, %72, %cst_48 {dimension_numbers = #tpu.dot_dimension_numbers<[1], [0], [0], [1], [0, 0, 1, 1], [], []>} : vector<8x8xf32>, vector<8x256xf32>, vector<8x256xf32> -> vector<8x256xf32>
    %76 = arith.addf %70, %75 : vector<8x256xf32>
    %c0_49 = arith.constant 0 : index
    %c144 = arith.constant 144 : index
    %77 = vector.load %arg9[%c0_49, %c144] : memref<8x512xf32, #tpu.memory_space<vmem>>, vector<8x256xf32>
    %c7 = arith.constant 7 : index
    %c0_50 = arith.constant 0 : index
    %c0_51 = arith.constant 0 : index
    %78 = vector.load %arg3[%c7, %c0_50, %c0_51] : memref<9x8x8xf32, #tpu.memory_space<vmem>>, vector<1x8x8xf32>
    %79 = vector.shape_cast %78 : vector<1x8x8xf32> to vector<8x8xf32>
    %cst_52 = arith.constant dense<0.000000e+00> : vector<8x256xf32>
    %80 = tpu.matmul %79, %77, %cst_52 {dimension_numbers = #tpu.dot_dimension_numbers<[1], [0], [0], [1], [0, 0, 1, 1], [], []>} : vector<8x8xf32>, vector<8x256xf32>, vector<8x256xf32> -> vector<8x256xf32>
    %81 = arith.addf %76, %80 : vector<8x256xf32>
    %c0_53 = arith.constant 0 : index
    %c145 = arith.constant 145 : index
    %82 = vector.load %arg9[%c0_53, %c145] : memref<8x512xf32, #tpu.memory_space<vmem>>, vector<8x256xf32>
    %83 = arith.mulf %82, %28 : vector<8x256xf32>
    %c8 = arith.constant 8 : index
    %c0_54 = arith.constant 0 : index
    %c0_55 = arith.constant 0 : index
    %84 = vector.load %arg3[%c8, %c0_54, %c0_55] : memref<9x8x8xf32, #tpu.memory_space<vmem>>, vector<1x8x8xf32>
    %85 = vector.shape_cast %84 : vector<1x8x8xf32> to vector<8x8xf32>
    %cst_56 = arith.constant dense<0.000000e+00> : vector<8x256xf32>
    %86 = tpu.matmul %85, %83, %cst_56 {dimension_numbers = #tpu.dot_dimension_numbers<[1], [0], [0], [1], [0, 0, 1, 1], [], []>} : vector<8x8xf32>, vector<8x256xf32>, vector<8x256xf32> -> vector<8x256xf32>
    %87 = arith.addf %81, %86 : vector<8x256xf32>
    %88 = vector.broadcast %35 : vector<8x1xf32> to vector<8x256xf32>
    %89 = arith.addf %87, %88 : vector<8x256xf32>
    %cst_57 = arith.constant 0.000000e+00 : f32
    %90 = vector.broadcast %cst_57 : f32 to vector<8x256xf32>
    %91 = arith.cmpf oge, %89, %90 : vector<8x256xf32>
    %cst_58 = arith.constant 0.00999999977 : f32
    %92 = vector.broadcast %cst_58 : f32 to vector<8x256xf32>
    %93 = arith.mulf %92, %89 : vector<8x256xf32>
    %94 = arith.select %91, %89, %93 : vector<8x256xi1>, vector<8x256xf32>
    %c0_59 = arith.constant 0 : index
    %c128_60 = arith.constant 128 : index
    %95 = vector.load %arg9[%c0_59, %c128_60] : memref<8x512xf32, #tpu.memory_space<vmem>>, vector<8x256xf32>
    tpu.vector_store %arg9[%c0_59, %c128_60], %94 {strides = array<i32>} : memref<8x512xf32, #tpu.memory_space<vmem>>, vector<8x256xf32>,
    %c0_61 = arith.constant 0 : index
    %c0_62 = arith.constant 0 : index
    %96 = vector.load %arg6[%c0_61, %c0_62] : memref<8x1xf32, #tpu.memory_space<vmem>>, vector<8x1xf32>
    %cst_63 = arith.constant 0.000000e+00 : f32
    %97 = vector.broadcast %cst_63 : f32 to vector<8x256xf32>
    %c0_64 = arith.constant 0 : index
    %c111_65 = arith.constant 111 : index
    %98 = vector.load %arg9[%c0_64, %c111_65] : memref<8x512xf32, #tpu.memory_space<vmem>>, vector<8x256xf32>
    %99 = arith.mulf %98, %24 : vector<8x256xf32>
    %c0_66 = arith.constant 0 : index
    %c0_67 = arith.constant 0 : index
    %c0_68 = arith.constant 0 : index
    %100 = vector.load %arg5[%c0_66, %c0_67, %c0_68] : memref<9x8x8xf32, #tpu.memory_space<vmem>>, vector<1x8x8xf32>
    %101 = vector.shape_cast %100 : vector<1x8x8xf32> to vector<8x8xf32>
    %cst_69 = arith.constant dense<0.000000e+00> : vector<8x256xf32>
    %102 = tpu.matmul %101, %99, %cst_69 {dimension_numbers = #tpu.dot_dimension_numbers<[1], [0], [0], [1], [0, 0, 1, 1], [], []>} : vector<8x8xf32>, vector<8x256xf32>, vector<8x256xf32> -> vector<8x256xf32>
    %103 = arith.addf %97, %102 : vector<8x256xf32>
    %c0_70 = arith.constant 0 : index
    %c112_71 = arith.constant 112 : index
    %104 = vector.load %arg9[%c0_70, %c112_71] : memref<8x512xf32, #tpu.memory_space<vmem>>, vector<8x256xf32>
    %c1_72 = arith.constant 1 : index
    %c0_73 = arith.constant 0 : index
    %c0_74 = arith.constant 0 : index
    %105 = vector.load %arg5[%c1_72, %c0_73, %c0_74] : memref<9x8x8xf32, #tpu.memory_space<vmem>>, vector<1x8x8xf32>
    %106 = vector.shape_cast %105 : vector<1x8x8xf32> to vector<8x8xf32>
    %cst_75 = arith.constant dense<0.000000e+00> : vector<8x256xf32>
    %107 = tpu.matmul %106, %104, %cst_75 {dimension_numbers = #tpu.dot_dimension_numbers<[1], [0], [0], [1], [0, 0, 1, 1], [], []>} : vector<8x8xf32>, vector<8x256xf32>, vector<8x256xf32> -> vector<8x256xf32>
    %108 = arith.addf %103, %107 : vector<8x256xf32>
    %c0_76 = arith.constant 0 : index
    %c113_77 = arith.constant 113 : index
    %109 = vector.load %arg9[%c0_76, %c113_77] : memref<8x512xf32, #tpu.memory_space<vmem>>, vector<8x256xf32>
    %110 = arith.mulf %109, %28 : vector<8x256xf32>
    %c2_78 = arith.constant 2 : index
    %c0_79 = arith.constant 0 : index
    %c0_80 = arith.constant 0 : index
    %111 = vector.load %arg5[%c2_78, %c0_79, %c0_80] : memref<9x8x8xf32, #tpu.memory_space<vmem>>, vector<1x8x8xf32>
    %112 = vector.shape_cast %111 : vector<1x8x8xf32> to vector<8x8xf32>
    %cst_81 = arith.constant dense<0.000000e+00> : vector<8x256xf32>
    %113 = tpu.matmul %112, %110, %cst_81 {dimension_numbers = #tpu.dot_dimension_numbers<[1], [0], [0], [1], [0, 0, 1, 1], [], []>} : vector<8x8xf32>, vector<8x256xf32>, vector<8x256xf32> -> vector<8x256xf32>
    %114 = arith.addf %108, %113 : vector<8x256xf32>
    %c0_82 = arith.constant 0 : index
    %c127_83 = arith.constant 127 : index
    %115 = vector.load %arg9[%c0_82, %c127_83] : memref<8x512xf32, #tpu.memory_space<vmem>>, vector<8x256xf32>
    %116 = arith.mulf %115, %24 : vector<8x256xf32>
    %c3_84 = arith.constant 3 : index
    %c0_85 = arith.constant 0 : index
    %c0_86 = arith.constant 0 : index
    %117 = vector.load %arg5[%c3_84, %c0_85, %c0_86] : memref<9x8x8xf32, #tpu.memory_space<vmem>>, vector<1x8x8xf32>
    %118 = vector.shape_cast %117 : vector<1x8x8xf32> to vector<8x8xf32>
    %cst_87 = arith.constant dense<0.000000e+00> : vector<8x256xf32>
    %119 = tpu.matmul %118, %116, %cst_87 {dimension_numbers = #tpu.dot_dimension_numbers<[1], [0], [0], [1], [0, 0, 1, 1], [], []>} : vector<8x8xf32>, vector<8x256xf32>, vector<8x256xf32> -> vector<8x256xf32>
    %120 = arith.addf %114, %119 : vector<8x256xf32>
    %c0_88 = arith.constant 0 : index
    %c128_89 = arith.constant 128 : index
    %121 = vector.load %arg9[%c0_88, %c128_89] : memref<8x512xf32, #tpu.memory_space<vmem>>, vector<8x256xf32>
    %c4_90 = arith.constant 4 : index
    %c0_91 = arith.constant 0 : index
    %c0_92 = arith.constant 0 : index
    %122 = vector.load %arg5[%c4_90, %c0_91, %c0_92] : memref<9x8x8xf32, #tpu.memory_space<vmem>>, vector<1x8x8xf32>
    %123 = vector.shape_cast %122 : vector<1x8x8xf32> to vector<8x8xf32>
    %cst_93 = arith.constant dense<0.000000e+00> : vector<8x256xf32>
    %124 = tpu.matmul %123, %121, %cst_93 {dimension_numbers = #tpu.dot_dimension_numbers<[1], [0], [0], [1], [0, 0, 1, 1], [], []>} : vector<8x8xf32>, vector<8x256xf32>, vector<8x256xf32> -> vector<8x256xf32>
    %125 = arith.addf %120, %124 : vector<8x256xf32>
    %c0_94 = arith.constant 0 : index
    %c129_95 = arith.constant 129 : index
    %126 = vector.load %arg9[%c0_94, %c129_95] : memref<8x512xf32, #tpu.memory_space<vmem>>, vector<8x256xf32>
    %127 = arith.mulf %126, %28 : vector<8x256xf32>
    %c5_96 = arith.constant 5 : index
    %c0_97 = arith.constant 0 : index
    %c0_98 = arith.constant 0 : index
    %128 = vector.load %arg5[%c5_96, %c0_97, %c0_98] : memref<9x8x8xf32, #tpu.memory_space<vmem>>, vector<1x8x8xf32>
    %129 = vector.shape_cast %128 : vector<1x8x8xf32> to vector<8x8xf32>
    %cst_99 = arith.constant dense<0.000000e+00> : vector<8x256xf32>
    %130 = tpu.matmul %129, %127, %cst_99 {dimension_numbers = #tpu.dot_dimension_numbers<[1], [0], [0], [1], [0, 0, 1, 1], [], []>} : vector<8x8xf32>, vector<8x256xf32>, vector<8x256xf32> -> vector<8x256xf32>
    %131 = arith.addf %125, %130 : vector<8x256xf32>
    %c0_100 = arith.constant 0 : index
    %c143_101 = arith.constant 143 : index
    %132 = vector.load %arg9[%c0_100, %c143_101] : memref<8x512xf32, #tpu.memory_space<vmem>>, vector<8x256xf32>
    %133 = arith.mulf %132, %24 : vector<8x256xf32>
    %c6_102 = arith.constant 6 : index
    %c0_103 = arith.constant 0 : index
    %c0_104 = arith.constant 0 : index
    %134 = vector.load %arg5[%c6_102, %c0_103, %c0_104] : memref<9x8x8xf32, #tpu.memory_space<vmem>>, vector<1x8x8xf32>
    %135 = vector.shape_cast %134 : vector<1x8x8xf32> to vector<8x8xf32>
    %cst_105 = arith.constant dense<0.000000e+00> : vector<8x256xf32>
    %136 = tpu.matmul %135, %133, %cst_105 {dimension_numbers = #tpu.dot_dimension_numbers<[1], [0], [0], [1], [0, 0, 1, 1], [], []>} : vector<8x8xf32>, vector<8x256xf32>, vector<8x256xf32> -> vector<8x256xf32>
    %137 = arith.addf %131, %136 : vector<8x256xf32>
    %c0_106 = arith.constant 0 : index
    %c144_107 = arith.constant 144 : index
    %138 = vector.load %arg9[%c0_106, %c144_107] : memref<8x512xf32, #tpu.memory_space<vmem>>, vector<8x256xf32>
    %c7_108 = arith.constant 7 : index
    %c0_109 = arith.constant 0 : index
    %c0_110 = arith.constant 0 : index
    %139 = vector.load %arg5[%c7_108, %c0_109, %c0_110] : memref<9x8x8xf32, #tpu.memory_space<vmem>>, vector<1x8x8xf32>
    %140 = vector.shape_cast %139 : vector<1x8x8xf32> to vector<8x8xf32>
    %cst_111 = arith.constant dense<0.000000e+00> : vector<8x256xf32>
    %141 = tpu.matmul %140, %138, %cst_111 {dimension_numbers = #tpu.dot_dimension_numbers<[1], [0], [0], [1], [0, 0, 1, 1], [], []>} : vector<8x8xf32>, vector<8x256xf32>, vector<8x256xf32> -> vector<8x256xf32>
    %142 = arith.addf %137, %141 : vector<8x256xf32>
    %c0_112 = arith.constant 0 : index
    %c145_113 = arith.constant 145 : index
    %143 = vector.load %arg9[%c0_112, %c145_113] : memref<8x512xf32, #tpu.memory_space<vmem>>, vector<8x256xf32>
    %144 = arith.mulf %143, %28 : vector<8x256xf32>
    %c8_114 = arith.constant 8 : index
    %c0_115 = arith.constant 0 : index
    %c0_116 = arith.constant 0 : index
    %145 = vector.load %arg5[%c8_114, %c0_115, %c0_116] : memref<9x8x8xf32, #tpu.memory_space<vmem>>, vector<1x8x8xf32>
    %146 = vector.shape_cast %145 : vector<1x8x8xf32> to vector<8x8xf32>
    %cst_117 = arith.constant dense<0.000000e+00> : vector<8x256xf32>
    %147 = tpu.matmul %146, %144, %cst_117 {dimension_numbers = #tpu.dot_dimension_numbers<[1], [0], [0], [1], [0, 0, 1, 1], [], []>} : vector<8x8xf32>, vector<8x256xf32>, vector<8x256xf32> -> vector<8x256xf32>
    %148 = arith.addf %142, %147 : vector<8x256xf32>
    %149 = vector.broadcast %96 : vector<8x1xf32> to vector<8x256xf32>
    %150 = arith.addf %148, %149 : vector<8x256xf32>
    %151 = vector.extract_strided_slice %150 {offsets = [0, 0], sizes = [4, 256], strides = [1, 1]} : vector<8x256xf32> to vector<4x256xf32>
    %c0_118 = arith.constant 0 : index
    %c0_119 = arith.constant 0 : index
    %c0_120 = arith.constant 0 : index
    %152 = vector.load %arg7[%c0_118, %c0_119, %c0_120] : memref<1x4x256xf32, #tpu.memory_space<vmem>>, vector<1x4x256xf32>
    %153 = vector.shape_cast %152 : vector<1x4x256xf32> to vector<4x256xf32>
    %154 = vector.shape_cast %151 : vector<4x256xf32> to vector<1x4x256xf32>
    tpu.vector_store %arg7[%c0_118, %c0_119, %c0_120], %154 {strides = array<i32>} : memref<1x4x256xf32, #tpu.memory_space<vmem>>, vector<1x4x256xf32>,
    %155 = vector.extract_strided_slice %150 {offsets = [4, 0], sizes = [4, 256], strides = [1, 1]} : vector<8x256xf32> to vector<4x256xf32>
    %c0_121 = arith.constant 0 : index
    %c0_122 = arith.constant 0 : index
    %c0_123 = arith.constant 0 : index
    %156 = vector.load %arg8[%c0_121, %c0_122, %c0_123] : memref<1x4x256xf32, #tpu.memory_space<vmem>>, vector<1x4x256xf32>
    %157 = vector.shape_cast %156 : vector<1x4x256xf32> to vector<4x256xf32>
    %158 = vector.shape_cast %155 : vector<4x256xf32> to vector<1x4x256xf32>
    tpu.vector_store %arg8[%c0_121, %c0_122, %c0_123], %158 {strides = array<i32>} : memref<1x4x256xf32, #tpu.memory_space<vmem>>, vector<1x4x256xf32>,
    return
  }
  func.func @transform_0(%arg0: i32) -> (i32, i32, i32) {
    %c0_i32 = arith.constant 0 : i32
    %c0_i32_0 = arith.constant 0 : i32
    %c0_i32_1 = arith.constant 0 : i32
    return %arg0, %c0_i32, %c0_i32_0 : i32, i32, i32
  }
  func.func @transform_1(%arg0: i32) -> (i32, i32, i32) {
    %c0_i32 = arith.constant 0 : i32
    %c0_i32_0 = arith.constant 0 : i32
    %c0_i32_1 = arith.constant 0 : i32
    return %arg0, %c0_i32, %c0_i32_0 : i32, i32, i32
  }
  func.func @transform_2(%arg0: i32) -> (i32, i32, i32) {
    %c0_i32 = arith.constant 0 : i32
    %c0_i32_0 = arith.constant 0 : i32
    %c0_i32_1 = arith.constant 0 : i32
    %c0_i32_2 = arith.constant 0 : i32
    return %c0_i32, %c0_i32_0, %c0_i32_1 : i32, i32, i32
  }
  func.func @transform_3(%arg0: i32) -> (i32, i32) {
    %c0_i32 = arith.constant 0 : i32
    %c0_i32_0 = arith.constant 0 : i32
    %c0_i32_1 = arith.constant 0 : i32
    return %c0_i32, %c0_i32_0 : i32, i32
  }
  func.func @transform_4(%arg0: i32) -> (i32, i32, i32) {
    %c0_i32 = arith.constant 0 : i32
    %c0_i32_0 = arith.constant 0 : i32
    %c0_i32_1 = arith.constant 0 : i32
    %c0_i32_2 = arith.constant 0 : i32
    return %c0_i32, %c0_i32_0, %c0_i32_1 : i32, i32, i32
  }
  func.func @transform_5(%arg0: i32) -> (i32, i32) {
    %c0_i32 = arith.constant 0 : i32
    %c0_i32_0 = arith.constant 0 : i32
    %c0_i32_1 = arith.constant 0 : i32
    return %c0_i32, %c0_i32_0 : i32, i32
  }
  func.func @transform_6(%arg0: i32) -> (i32, i32, i32) {
    %c0_i32 = arith.constant 0 : i32
    %c0_i32_0 = arith.constant 0 : i32
    %c0_i32_1 = arith.constant 0 : i32
    return %arg0, %c0_i32, %c0_i32_0 : i32, i32, i32
  }
  func.func @transform_7(%arg0: i32) -> (i32, i32, i32) {
    %c0_i32 = arith.constant 0 : i32
    %c0_i32_0 = arith.constant 0 : i32
    %c0_i32_1 = arith.constant 0 : i32
    return %arg0, %c0_i32, %c0_i32_0 : i32, i32, i32
  }
}

</mosaic_0001>

<llo_original>
// kernel: resblock_forward.1
$region0: #{resblock_forward.1}
  #allocation0 [shape = 'u32[]', space=smem, size = 0x4, offset = 0x4, fixed_abs, tag = 'smem constant byte address 0x4 - core index']
  #allocation1 [shape = 'u32[72,128]{1,0:T(1,128)}', space=vmem, size = 0x9000, scoped, tag = 'internal scratch']
  #allocation2 [shape = 'f32[8,512]{1,0:T(8,128)}', space=vmem, size = 0x4000, scoped, tag = 'scratch operand']
  %s0 = inlined_call_operand.vmem [shape: f32[2,4,256], index: 0, kind: input, shape index: {}]
  %s1 = inlined_call_operand.vmem [shape: f32[2,4,256], index: 1, kind: input, shape index: {}]
  %s2 = inlined_call_operand.vmem [shape: f32[9,8,8], index: 2, kind: input, shape index: {}]
  %s3 = inlined_call_operand.vmem [shape: f32[8,1], index: 3, kind: input, shape index: {}]
  %s4 = inlined_call_operand.vmem [shape: f32[9,8,8], index: 4, kind: input, shape index: {}]
  %s5 = inlined_call_operand.vmem [shape: f32[8,1], index: 5, kind: input, shape index: {}]
  %s6 = inlined_call_operand.vmem [shape: f32[2,4,256], index: 6, kind: output, shape index: {0}]
  %s7 = inlined_call_operand.vmem [shape: f32[2,4,256], index: 7, kind: output, shape index: {1}]
  %8 = xla_tuple %s6, %s7
  %s9 = sld [smem:[#allocation0]]
  $region65: #{resblock_forward.1} parent=0
    _
  %s11 = ssub.s32 1, %s9
  %s12 = scalar_select 0, %s11, %s9
  loop: start=0, step=1, limit=4
  $region2: #{resblock_forward.1} parent=0 // loop_pre_header
    _
  $region3: #{resblock_forward.1} parent=0 // loop_header
    %s14 = sphi 0, %s18
    %p15 = scmp.ge.s32.totalorder %s14, 4
    %s24 = sphi 0, %s26
    %s27 = sphi 0, %s24
    %s28 = sphi 0, %s27
    %s44 = sphi 0, %s28
    %s50 = sphi 0, %s52
    %s53 = sphi 0, %s50
    %s54 = sphi 0, %s53
    %s70 = sphi 0, %s54
    %s74 = sphi 0, %s74
    %s76 = sphi 0, %s74
    %s77 = sphi 0, %s76
    %s91 = sphi 0, %s77
    %s95 = sphi 0, %s95
    %s97 = sphi 0, %s95
    %s98 = sphi 0, %s97
    %s112 = sphi 0, %s98
    %s116 = sphi 0, %s116
    %s118 = sphi 0, %s116
    %s119 = sphi 0, %s118
    %s133 = sphi 0, %s119
    %s137 = sphi 0, %s137
    %s139 = sphi 0, %s137
    %s140 = sphi 0, %s139
    %s154 = sphi 0, %s140
    %s160 = sphi 0, %s162
    %s163 = sphi 0, %s160
    %s164 = sphi 0, %s163
    %s180 = sphi 0, %s164
    %s186 = sphi 0, %s188
    %s189 = sphi 0, %s186
    %s190 = sphi 0, %s189
    %s206 = sphi 0, %s190
  $region4: #{resblock_forward.1} parent=0 // loop_header_branch
    %17 = sbr.rel (%p15) target = $region8
  $region5: #{resblock_forward.1} parent=0 // loop_body
    %s19 = ssub.s32 %s14, 1
    %s20 = ssub.s32 %s14, 2
    %s21 = sadd.s32 %s14, 1
    %s22 = ssub.s32 %s14, %s21
    %p23 = scmp.eq.s32.totalorder %s22, 0
    %s25 = sadd.s32 %s24, 1
    %s26 = scalar_select %p23, %s24, %s25
    %p29 = pneg %p23
    %p30 = scmp.eq.s32.totalorder %s14, 1
    %p31 = por %p29, %p30
    %p32 = scmp.ne.s32.totalorder %s24, %s27
    %p33 = scmp.eq.s32.totalorder %s14, 0
    %p34 = por %p32, %p33
    %p35 = scmp.ne.s32.totalorder %s24, %s27
    %p36 = scmp.eq.s32.totalorder %s19, 1
    %p37 = por %p35, %p36
    %p38 = scmp.ne.s32.totalorder %s27, %s28
    %p39 = scmp.eq.s32.totalorder %s19, 0
    %p40 = por %p38, %p39
    %p41 = scmp.ne.s32.totalorder %s27, %s28
    %p42 = scmp.eq.s32.totalorder %s20, 1
    %p43 = por %p41, %p42
    %p45 = scmp.ne.s32.totalorder %s28, %s44
    %p46 = scmp.eq.s32.totalorder %s20, 0
    %p47 = por %p45, %p46
    %s48 = ssub.s32 %s14, %s21
    %p49 = scmp.eq.s32.totalorder %s48, 0
    %s51 = sadd.s32 %s50, 1
    %s52 = scalar_select %p49, %s50, %s51
    %p55 = pneg %p49
    %p56 = scmp.eq.s32.totalorder %s14, 1
    %p57 = por %p55, %p56
    %p58 = scmp.ne.s32.totalorder %s50, %s53
    %p59 = scmp.eq.s32.totalorder %s14, 0
    %p60 = por %p58, %p59
    %p61 = scmp.ne.s32.totalorder %s50, %s53
    %p62 = scmp.eq.s32.totalorder %s19, 1
    %p63 = por %p61, %p62
    %p64 = scmp.ne.s32.totalorder %s53, %s54
    %p65 = scmp.eq.s32.totalorder %s19, 0
    %p66 = por %p64, %p65
    %p67 = scmp.ne.s32.totalorder %s53, %s54
    %p68 = scmp.eq.s32.totalorder %s20, 1
    %p69 = por %p67, %p68
    %p71 = scmp.ne.s32.totalorder %s54, %s70
    %p72 = scmp.eq.s32.totalorder %s20, 0
    %p73 = por %p71, %p72
    %s75 = sadd.s32 %s74, 1
    %p78 = scmp.eq.s32.totalorder %s14, 1
    %p79 = scmp.ne.s32.totalorder %s74, %s76
    %p80 = scmp.eq.s32.totalorder %s14, 0
    %p81 = por %p79, %p80
    %p82 = scmp.ne.s32.totalorder %s74, %s76
    %p83 = scmp.eq.s32.totalorder %s19, 1
    %p84 = por %p82, %p83
    %p85 = scmp.ne.s32.totalorder %s76, %s77
    %p86 = scmp.eq.s32.totalorder %s19, 0
    %p87 = por %p85, %p86
    %p88 = scmp.ne.s32.totalorder %s76, %s77
    %p89 = scmp.eq.s32.totalorder %s20, 1
    %p90 = por %p88, %p89
    %p92 = scmp.ne.s32.totalorder %s77, %s91
    %p93 = scmp.eq.s32.totalorder %s20, 0
    %p94 = por %p92, %p93
    %s96 = sadd.s32 %s95, 1
    %p99 = scmp.eq.s32.totalorder %s14, 1
    %p100 = scmp.ne.s32.totalorder %s95, %s97
    %p101 = scmp.eq.s32.totalorder %s14, 0
    %p102 = por %p100, %p101
    %p103 = scmp.ne.s32.totalorder %s95, %s97
    %p104 = scmp.eq.s32.totalorder %s19, 1
    %p105 = por %p103, %p104
    %p106 = scmp.ne.s32.totalorder %s97, %s98
    %p107 = scmp.eq.s32.totalorder %s19, 0
    %p108 = por %p106, %p107
    %p109 = scmp.ne.s32.totalorder %s97, %s98
    %p110 = scmp.eq.s32.totalorder %s20, 1
    %p111 = por %p109, %p110
    %p113 = scmp.ne.s32.totalorder %s98, %s112
    %p114 = scmp.eq.s32.totalorder %s20, 0
    %p115 = por %p113, %p114
    %s117 = sadd.s32 %s116, 1
    %p120 = scmp.eq.s32.totalorder %s14, 1
    %p121 = scmp.ne.s32.totalorder %s116, %s118
    %p122 = scmp.eq.s32.totalorder %s14, 0
    %p123 = por %p121, %p122
    %p124 = scmp.ne.s32.totalorder %s116, %s118
    %p125 = scmp.eq.s32.totalorder %s19, 1
    %p126 = por %p124, %p125
    %p127 = scmp.ne.s32.totalorder %s118, %s119
    %p128 = scmp.eq.s32.totalorder %s19, 0
    %p129 = por %p127, %p128
    %p130 = scmp.ne.s32.totalorder %s118, %s119
    %p131 = scmp.eq.s32.totalorder %s20, 1
    %p132 = por %p130, %p131
    %p134 = scmp.ne.s32.totalorder %s119, %s133
    %p135 = scmp.eq.s32.totalorder %s20, 0
    %p136 = por %p134, %p135
    %s138 = sadd.s32 %s137, 1
    %p141 = scmp.eq.s32.totalorder %s14, 1
    %p142 = scmp.ne.s32.totalorder %s137, %s139
    %p143 = scmp.eq.s32.totalorder %s14, 0
    %p144 = por %p142, %p143
    %p145 = scmp.ne.s32.totalorder %s137, %s139
    %p146 = scmp.eq.s32.totalorder %s19, 1
    %p147 = por %p145, %p146
    %p148 = scmp.ne.s32.totalorder %s139, %s140
    %p149 = scmp.eq.s32.totalorder %s19, 0
    %p150 = por %p148, %p149
    %p151 = scmp.ne.s32.totalorder %s139, %s140
    %p152 = scmp.eq.s32.totalorder %s20, 1
    %p153 = por %p151, %p152
    %p155 = scmp.ne.s32.totalorder %s140, %s154
    %p156 = scmp.eq.s32.totalorder %s20, 0
    %p157 = por %p155, %p156
    %s158 = ssub.s32 %s14, %s21
    %p159 = scmp.eq.s32.totalorder %s158, 0
    %s161 = sadd.s32 %s160, 1
    %s162 = scalar_select %p159, %s160, %s161
    %p165 = pneg %p159
    %p166 = scmp.eq.s32.totalorder %s14, 1
    %p167 = por %p165, %p166
    %p168 = scmp.ne.s32.totalorder %s160, %s163
    %p169 = scmp.eq.s32.totalorder %s14, 0
    %p170 = por %p168, %p169
    %p171 = scmp.ne.s32.totalorder %s160, %s163
    %p172 = scmp.eq.s32.totalorder %s19, 1
    %p173 = por %p171, %p172
    %p174 = scmp.ne.s32.totalorder %s163, %s164
    %p175 = scmp.eq.s32.totalorder %s19, 0
    %p176 = por %p174, %p175
    %p177 = scmp.ne.s32.totalorder %s163, %s164
    %p178 = scmp.eq.s32.totalorder %s20, 1
    %p179 = por %p177, %p178
    %p181 = scmp.ne.s32.totalorder %s164, %s180
    %p182 = scmp.eq.s32.totalorder %s20, 0
    %p183 = por %p181, %p182
    %s184 = ssub.s32 %s14, %s21
    %p185 = scmp.eq.s32.totalorder %s184, 0
    %s187 = sadd.s32 %s186, 1
    %s188 = scalar_select %p185, %s186, %s187
    %p191 = pneg %p185
    %p192 = scmp.eq.s32.totalorder %s14, 1
    %p193 = por %p191, %p192
    %p194 = scmp.ne.s32.totalorder %s186, %s189
    %p195 = scmp.eq.s32.totalorder %s14, 0
    %p196 = por %p194, %p195
    %p197 = scmp.ne.s32.totalorder %s186, %s189
    %p198 = scmp.eq.s32.totalorder %s19, 1
    %p199 = por %p197, %p198
    %p200 = scmp.ne.s32.totalorder %s189, %s190
    %p201 = scmp.eq.s32.totalorder %s19, 0
    %p202 = por %p200, %p201
    %p203 = scmp.ne.s32.totalorder %s189, %s190
    %p204 = scmp.eq.s32.totalorder %s20, 1
    %p205 = por %p203, %p204
    %p207 = scmp.ne.s32.totalorder %s190, %s206
    %p208 = scmp.eq.s32.totalorder %s20, 0
    %p209 = por %p207, %p208
    %p210 = scmp.le.s32.totalorder 1, %s14
    %p211 = scmp.lt.s32.totalorder %s14, 3
    %p212 = pnand %p210, %p211
    %p213 = pneg %p212
    // Predicated region
    $region9: #{resblock_forward.1} parent=5 // pred_check
      _
    $region10: #{resblock_forward.1} parent=5 // pred_check_branch
      %215 = sbr.rel (%p212) target = $region12
    $region11: #{resblock_forward.1} parent=5 // pred_region
      %s216 = ssub.s32 %s14, 1
      // Predicated region
      $region13: #{resblock_forward.1} parent=11 // pred_check
        %p217 = pneg %p87
      $region14: #{resblock_forward.1} parent=11 // pred_check_branch
        %219 = sbr.rel (%p217) target = $region16
      $region15: #{resblock_forward.1} parent=11 // pred_region
        _
      $region16: #{resblock_forward.1} parent=11 // pred_fallthru
        _
      // Predicated region
      $region17: #{resblock_forward.1} parent=11 // pred_check
        %p220 = pneg %p108
      $region18: #{resblock_forward.1} parent=11 // pred_check_branch
        %222 = sbr.rel (%p220) target = $region20
      $region19: #{resblock_forward.1} parent=11 // pred_region
        _
      $region20: #{resblock_forward.1} parent=11 // pred_fallthru
        _
      // Predicated region
      $region21: #{resblock_forward.1} parent=11 // pred_check
        %p223 = pneg %p129
      $region22: #{resblock_forward.1} parent=11 // pred_check_branch
        %225 = sbr.rel (%p223) target = $region24
      $region23: #{resblock_forward.1} parent=11 // pred_region
        _
      $region24: #{resblock_forward.1} parent=11 // pred_fallthru
        _
      // Predicated region
      $region25: #{resblock_forward.1} parent=11 // pred_check
        %p226 = pneg %p150
      $region26: #{resblock_forward.1} parent=11 // pred_check_branch
        %228 = sbr.rel (%p226) target = $region28
      $region27: #{resblock_forward.1} parent=11 // pred_region
        _
      $region28: #{resblock_forward.1} parent=11 // pred_fallthru
        _
    $region12: #{resblock_forward.1} parent=5 // pred_fallthru
      _
    %p229 = scmp.lt.s32.totalorder %s14, 2
    // Predicated region
    $region29: #{resblock_forward.1} parent=5 // pred_check
      %p230 = pneg %p229
    $region30: #{resblock_forward.1} parent=5 // pred_check_branch
      %232 = sbr.rel (%p230) target = $region32
    $region31: #{resblock_forward.1} parent=5 // pred_region
      // Predicated region
      $region33: #{resblock_forward.1} parent=31 // pred_check
        %p233 = pneg %p34
      $region34: #{resblock_forward.1} parent=31 // pred_check_branch
        %235 = sbr.rel (%p233) target = $region36
      $region35: #{resblock_forward.1} parent=31 // pred_region
        %p236 = scmp.lt.s32.totalorder %s14, 1
        %s237 = scalar_select %p236, %s14, 1
        %s238 = smul.addr %s237, 2
        %s239 = smul.addr %s238, 4
        %s240 = scalar_lea.vmem %s0, %s239
      $region36: #{resblock_forward.1} parent=31 // pred_fallthru
        _
      // Predicated region
      $region37: #{resblock_forward.1} parent=31 // pred_check
        %p241 = pneg %p60
      $region38: #{resblock_forward.1} parent=31 // pred_check_branch
        %243 = sbr.rel (%p241) target = $region40
      $region39: #{resblock_forward.1} parent=31 // pred_region
        %p244 = scmp.lt.s32.totalorder %s14, 1
        %s245 = scalar_select %p244, %s14, 1
        %s246 = smul.addr %s245, 2
        %s247 = smul.addr %s246, 4
        %s248 = scalar_lea.vmem %s1, %s247
      $region40: #{resblock_forward.1} parent=31 // pred_fallthru
        _
    $region32: #{resblock_forward.1} parent=5 // pred_fallthru
      _
    %p249 = scmp.le.s32.totalorder 1, %s14
    %p250 = scmp.lt.s32.totalorder %s14, 3
    %p251 = pnand %p249, %p250
    %p252 = pneg %p251
    // Predicated region
    $region41: #{resblock_forward.1} parent=5 // pred_check
      _
    $region42: #{resblock_forward.1} parent=5 // pred_check_branch
      %254 = sbr.rel (%p251) target = $region44
    $region43: #{resblock_forward.1} parent=5 // pred_region
      %s255 = ssub.s32 %s14, 1
      %p256 = scmp.lt.s32.totalorder %s19, 1
      %s257 = scalar_select %p256, %s19, 1
      %s258 = smul.addr %s257, 2
      %s259 = smul.addr %s258, 4
      %s260 = scalar_lea.vmem %s0, %s259
      %p261 = pneg %p40
      %p262 = pneg %p37
      %p263 = scmp.lt.s32.totalorder %s19, 1
      %s264 = scalar_select %p263, %s19, 1
      %s265 = smul.addr %s264, 2
      %s266 = smul.addr %s265, 4
      %s267 = scalar_lea.vmem %s1, %s266
      %p268 = pneg %p66
      %p269 = pneg %p63
      %p270 = pneg %p87
      %p271 = pneg %p84
      %p272 = pneg %p108
      %p273 = pneg %p105
      %p274 = pneg %p129
      %p275 = pneg %p126
      %p276 = pneg %p150
      %p277 = pneg %p147
      %p278 = pneg %p176
      %p279 = pneg %p173
      %p280 = scmp.lt.s32.totalorder %s19, 1
      %s281 = scalar_select %p280, %s19, 1
      %s282 = smul.addr %s281, 2
      %s283 = smul.addr %s282, 4
      %s284 = scalar_lea.vmem %s6, %s283
      %p285 = pneg %p202
      %p286 = pneg %p199
      %p287 = scmp.lt.s32.totalorder %s19, 1
      %s288 = scalar_select %p287, %s19, 1
      %s289 = smul.addr %s288, 2
      %s290 = smul.addr %s289, 4
      %s291 = scalar_lea.vmem %s7, %s290
      %p292 = scmp.lt.s32.totalorder %s19, 1
      %s293 = scalar_select %p292, %s19, 1
      %s294 = smul.addr %s293, 2
      %s295 = smul.addr %s294, 4
      %s296 = scalar_lea.vmem %s0, %s295
      %p297 = scmp.lt.s32.totalorder %s19, 1
      %s298 = scalar_select %p297, %s19, 1
      %s299 = smul.addr %s298, 2
      %s300 = smul.addr %s299, 4
      %s301 = scalar_lea.vmem %s1, %s300
      %p302 = scmp.lt.s32.totalorder %s19, 1
      %s303 = scalar_select %p302, %s19, 1
      %s304 = smul.addr %s303, 2
      %s305 = smul.addr %s304, 4
      %s306 = scalar_lea.vmem %s6, %s305
      %p307 = scmp.lt.s32.totalorder %s19, 1
      %s308 = scalar_select %p307, %s19, 1
      %s309 = smul.addr %s308, 2
      %s310 = smul.addr %s309, 4
      %s311 = scalar_lea.vmem %s7, %s310
      %312 = vst [vmem:[#allocation2] sm:$0xff] 0.0
      %313 = vst [vmem:[#allocation2 + $0x18] sm:$0xff] 0.0
      %v314 = vlaneseq
      %v315 = vand.u32 %v314, 127
      %v316 = vadd.s32 %v315, 128
      %vm317 = vcmp.lt.s32.totalorder %v315, 0
      %v318 = vsub.s32 0, %v315
      %v319 = vsel %vm317, %v318, %v315
      %v320 = vshrl.u32 %v319, 4
      %v321 = vand.u32 %v319, 15
      %v322 = vsub.s32 0, %v321
      %v323 = vsel %vm317, %v322, %v321
      %vm324 = vcmp.lt.s32.totalorder %v316, 0
      %v325 = vsub.s32 0, %v316
      %v326 = vsel %vm324, %v325, %v316
      %v327 = vshrl.u32 %v326, 4
      %v328 = vand.u32 %v326, 15
      %v329 = vsub.s32 0, %v328
      %v330 = vsel %vm324, %v329, %v328
      %vm331 = vcmp.ne.s32.totalorder %v323, 0
      %vm332 = vcmp.ne.s32.totalorder %v330, 0
      %vm333 = vcmp.lt.s32.totalorder %v323, 0
      %vm334 = vcmp.lt.s32.totalorder %v330, 0
      %vm335 = vmand %vm333, %vm331
      %vm336 = vmand %vm334, %vm332
      %v337 = vadd.s32 %v323, 16
      %v338 = vadd.s32 %v330, 16
      %v339 = vsel %vm335, %v337, %v323
      %v340 = vsel %vm336, %v338, %v330
      %vm341 = vcmp.ge.s32.totalorder %v339, 1
      %vm342 = vcmp.ge.s32.totalorder %v340, 1
      %v343 = vsel %vm341, 1, 0
      %v344 = vsel %vm342, 1, 0
      %v345 = vcvt.s32.f32 %v343
      %v346 = vcvt.s32.f32 %v344
      %vm347 = vcmp.le.s32.totalorder %v339, 14
      %vm348 = vcmp.le.s32.totalorder %v340, 14
      %v349 = vsel %vm347, 1, 0
      %v350 = vsel %vm348, 1, 0
      %v351 = vcvt.s32.f32 %v349
      %v352 = vcvt.s32.f32 %v350
      %v353 = vld [vmem:[%s296] sm:$0xff]
      %355 = vst [vmem:[#allocation1] ss:$2 sm:$0xff] %v353
      %v356 = vld.sshfl [vmem:[#allocation1] sm:$0xff pattern:$0x75316420]
      %v357 = vld.sshfl [vmem:[#allocation1 + $0x8] sm:$0xff pattern:$0x75316420]
      %360 = vst [vmem:[#allocation2 + $0x8] sm:$0xf] %v356
      %361 = vst [vmem:[#allocation2 + $0x10] sm:$0xf] %v357
      %v362 = vld [vmem:[%s301] sm:$0xff]
      %s364 = scalar_lea.vmem [#allocation1], 1
      %365 = vst [vmem:[%s364] ss:$2 sm:$0xff] %v362
      %v366 = vld.sshfl [vmem:[#allocation1] sm:$0xff pattern:$0x75316420]
      %v367 = vld.sshfl [vmem:[#allocation1 + $0x8] sm:$0xff pattern:$0x75316420]
      %370 = vst [vmem:[#allocation2 + $0x8] sm:$0xf0] %v366
      %371 = vst [vmem:[#allocation2 + $0x10] sm:$0xf0] %v367
      %v372 = vld [vmem:[%s3] sm:$0xff]
      %v373 = vld [vmem:[#allocation2] sm:$0xff]
      %v374 = vld [vmem:[#allocation2 + $0x8] sm:$0xff]
      %v375 = vld [vmem:[#allocation2 + $0x10] sm:$0xff]
      %378 = vrot.lane.b32.xlu0 %v345, 111
      %v379 = vpop.permute.xlu0 %378
      %380 = vrot.lane.b32.xlu0 %v346, 111
      %v381 = vpop.permute.xlu0 %380
      %vm382 = vcmask 908288
      %v383 = vsel %vm382, %v379, %v381
      %v387 = vmul.f32 %v373, %v379
      %v388 = vmul.f32 %v374, %v383
      %v389 = vmul.f32 %v375, %v381
      %v390 = vld [vmem:[%s2] sm:$0xff]
      %s391 = scalar_lea.vmem %s2, 8
      %v392 = vld [vmem:[%s391] sm:$0xff]
      %396 = vrot.lane.b32.xlu0 %v373, 16
      %v397 = vpop.permute.xlu0 %396
      %398 = vrot.lane.b32.xlu0 %v374, 16
      %v399 = vpop.permute.xlu0 %398
      %400 = vrot.lane.b32.xlu0 %v375, 16
      %v401 = vpop.permute.xlu0 %400
      %vm402 = vcmask 130048
      %v403 = vsel %vm402, %v397, %v399
      %v404 = vsel %vm402, %v399, %v401
      %vm407 = vcmask 64512
      %v409 = vsel %vm407, %v392, 0
      %411 = vmatpush.msra.mxu0 0.0
      %412 = vmatpush.msra.mxu0 0.0
      %413 = vmatpush.msra.mxu0 0.0
      %414 = vmatpush.msra.mxu0 0.0
      %415 = vmatpush.msra.mxu0 0.0
      %416 = vmatpush.msra.mxu0 0.0
      %417 = vmatpush.msra.mxu0 0.0
      %418 = vmatpush.msra.mxu0 0.0
      %419 = vmatpush.msra.mxu0 0.0
      %420 = vmatpush.msra.mxu0 0.0
      %421 = vmatpush.msra.mxu0 0.0
      %422 = vmatpush.msra.mxu0 0.0
      %423 = vmatpush.msra.mxu0 0.0
      %424 = vmatpush.msra.mxu0 0.0
      %425 = vmatpush.msra.mxu0 0.0
      %426 = vmatpush.msra.mxu0 %v403
      %427 = vmatmul.f32.gmra.mxu0 %v409
      %v428 = vpop.f32.mrf.mxu0
      %v429 = vadd.f32 0.0, %v428
      %430 = vdwg.mxu0
      %431 = vmatpush.msra.mxu0 0.0
      %432 = vmatpush.msra.mxu0 0.0
      %433 = vmatpush.msra.mxu0 0.0
      %434 = vmatpush.msra.mxu0 0.0
      %435 = vmatpush.msra.mxu0 0.0
      %436 = vmatpush.msra.mxu0 0.0
      %437 = vmatpush.msra.mxu0 0.0
      %438 = vmatpush.msra.mxu0 0.0
      %439 = vmatpush.msra.mxu0 0.0
      %440 = vmatpush.msra.mxu0 0.0
      %441 = vmatpush.msra.mxu0 0.0
      %442 = vmatpush.msra.mxu0 0.0
      %443 = vmatpush.msra.mxu0 0.0
      %444 = vmatpush.msra.mxu0 0.0
      %445 = vmatpush.msra.mxu0 0.0
      %446 = vmatpush.msra.mxu0 %v404
      %447 = vmatmul.f32.gmra.mxu0 %v409
      %v448 = vpop.f32.mrf.mxu0
      %v449 = vadd.f32 0.0, %v448
      %450 = vdwg.mxu0
      %454 = vrot.lane.b32.xlu0 %v387, 17
      %v455 = vpop.permute.xlu0 %454
      %456 = vrot.lane.b32.xlu0 %v388, 17
      %v457 = vpop.permute.xlu0 %456
      %458 = vrot.lane.b32.xlu0 %v389, 17
      %v459 = vpop.permute.xlu0 %458
      %vm460 = vcmask 138240
      %v461 = vsel %vm460, %v455, %v457
      %v462 = vsel %vm460, %v457, %v459
      %v466 = vsel %vm407, %v390, 0
      %468 = vmatpush.msra.mxu0 0.0
      %469 = vmatpush.msra.mxu0 0.0
      %470 = vmatpush.msra.mxu0 0.0
      %471 = vmatpush.msra.mxu0 0.0
      %472 = vmatpush.msra.mxu0 0.0
      %473 = vmatpush.msra.mxu0 0.0
      %474 = vmatpush.msra.mxu0 0.0
      %475 = vmatpush.msra.mxu0 0.0
      %476 = vmatpush.msra.mxu0 0.0
      %477 = vmatpush.msra.mxu0 0.0
      %478 = vmatpush.msra.mxu0 0.0
      %479 = vmatpush.msra.mxu0 0.0
      %480 = vmatpush.msra.mxu0 0.0
      %481 = vmatpush.msra.mxu0 0.0
      %482 = vmatpush.msra.mxu0 0.0
      %483 = vmatpush.msra.mxu0 %v461
      %484 = vmatmul.f32.gmra.mxu0 %v466
      %v485 = vpop.f32.mrf.mxu0
      %v486 = vadd.f32 %v429, %v485
      %487 = vdwg.mxu0
      %488 = vmatpush.msra.mxu0 0.0
      %489 = vmatpush.msra.mxu0 0.0
      %490 = vmatpush.msra.mxu0 0.0
      %491 = vmatpush.msra.mxu0 0.0
      %492 = vmatpush.msra.mxu0 0.0
      %493 = vmatpush.msra.mxu0 0.0
      %494 = vmatpush.msra.mxu0 0.0
      %495 = vmatpush.msra.mxu0 0.0
      %496 = vmatpush.msra.mxu0 0.0
      %497 = vmatpush.msra.mxu0 0.0
      %498 = vmatpush.msra.mxu0 0.0
      %499 = vmatpush.msra.mxu0 0.0
      %500 = vmatpush.msra.mxu0 0.0
      %501 = vmatpush.msra.mxu0 0.0
      %502 = vmatpush.msra.mxu0 0.0
      %503 = vmatpush.msra.mxu0 %v462
      %504 = vmatmul.f32.gmra.mxu0 %v466
      %v505 = vpop.f32.mrf.mxu0
      %v506 = vadd.f32 %v449, %v505
      %507 = vdwg.mxu0
      %510 = vrot.lane.b32.xlu0 %v351, 113
      %v511 = vpop.permute.xlu0 %510
      %512 = vrot.lane.b32.xlu0 %v352, 113
      %v513 = vpop.permute.xlu0 %512
      %vm514 = vcmask 924672
      %v515 = vsel %vm514, %v511, %v513
      %v519 = vmul.f32 %v373, %v511
      %v520 = vmul.f32 %v374, %v515
      %v521 = vmul.f32 %v375, %v513
      %s522 = scalar_lea.vmem %s2, 16
      %v523 = vld [vmem:[%s522] sm:$0xff]
      %527 = vrot.lane.b32.xlu0 %v519, 15
      %v528 = vpop.permute.xlu0 %527
      %529 = vrot.lane.b32.xlu0 %v520, 15
      %v530 = vpop.permute.xlu0 %529
      %531 = vrot.lane.b32.xlu0 %v521, 15
      %v532 = vpop.permute.xlu0 %531
      %vm533 = vcmask 121856
      %v534 = vsel %vm533, %v528, %v530
      %v535 = vsel %vm533, %v530, %v532
      %v539 = vsel %vm407, %v523, 0
      %541 = vmatpush.msra.mxu0 0.0
      %542 = vmatpush.msra.mxu0 0.0
      %543 = vmatpush.msra.mxu0 0.0
      %544 = vmatpush.msra.mxu0 0.0
      %545 = vmatpush.msra.mxu0 0.0
      %546 = vmatpush.msra.mxu0 0.0
      %547 = vmatpush.msra.mxu0 0.0
      %548 = vmatpush.msra.mxu0 0.0
      %549 = vmatpush.msra.mxu0 0.0
      %550 = vmatpush.msra.mxu0 0.0
      %551 = vmatpush.msra.mxu0 0.0
      %552 = vmatpush.msra.mxu0 0.0
      %553 = vmatpush.msra.mxu0 0.0
      %554 = vmatpush.msra.mxu0 0.0
      %555 = vmatpush.msra.mxu0 0.0
      %556 = vmatpush.msra.mxu0 %v534
      %557 = vmatmul.f32.gmra.mxu0 %v539
      %v558 = vpop.f32.mrf.mxu0
      %v559 = vadd.f32 0.0, %v558
      %560 = vdwg.mxu0
      %561 = vmatpush.msra.mxu0 0.0
      %562 = vmatpush.msra.mxu0 0.0
      %563 = vmatpush.msra.mxu0 0.0
      %564 = vmatpush.msra.mxu0 0.0
      %565 = vmatpush.msra.mxu0 0.0
      %566 = vmatpush.msra.mxu0 0.0
      %567 = vmatpush.msra.mxu0 0.0
      %568 = vmatpush.msra.mxu0 0.0
      %569 = vmatpush.msra.mxu0 0.0
      %570 = vmatpush.msra.mxu0 0.0
      %571 = vmatpush.msra.mxu0 0.0
      %572 = vmatpush.msra.mxu0 0.0
      %573 = vmatpush.msra.mxu0 0.0
      %574 = vmatpush.msra.mxu0 0.0
      %575 = vmatpush.msra.mxu0 0.0
      %576 = vmatpush.msra.mxu0 %v535
      %577 = vmatmul.f32.gmra.mxu0 %v539
      %v578 = vpop.f32.mrf.mxu0
      %v579 = vadd.f32 0.0, %v578
      %580 = vdwg.mxu0
      %v581 = vadd.f32 %v486, %v559
      %v582 = vadd.f32 %v506, %v579
      %583 = vrot.lane.b32.xlu0 %v345, 127
      %v584 = vpop.permute.xlu0 %583
      %585 = vrot.lane.b32.xlu0 %v346, 127
      %v586 = vpop.permute.xlu0 %585
      %vm587 = vcmask 1039360
      %v588 = vsel %vm587, %v584, %v586
      %v592 = vmul.f32 %v373, %v584
      %v593 = vmul.f32 %v374, %v588
      %v594 = vmul.f32 %v375, %v586
      %s595 = scalar_lea.vmem %s2, 24
      %v596 = vld [vmem:[%s595] sm:$0xff]
      %600 = vrot.lane.b32.xlu0 %v592, 1
      %v601 = vpop.permute.xlu0 %600
      %602 = vrot.lane.b32.xlu0 %v593, 1
      %v603 = vpop.permute.xlu0 %602
      %604 = vrot.lane.b32.xlu0 %v594, 1
      %v605 = vpop.permute.xlu0 %604
      %vm606 = vcmask 7168
      %v607 = vsel %vm606, %v601, %v603
      %v608 = vsel %vm606, %v603, %v605
      %v612 = vsel %vm407, %v596, 0
      %614 = vmatpush.msra.mxu0 0.0
      %615 = vmatpush.msra.mxu0 0.0
      %616 = vmatpush.msra.mxu0 0.0
      %617 = vmatpush.msra.mxu0 0.0
      %618 = vmatpush.msra.mxu0 0.0
      %619 = vmatpush.msra.mxu0 0.0
      %620 = vmatpush.msra.mxu0 0.0
      %621 = vmatpush.msra.mxu0 0.0
      %622 = vmatpush.msra.mxu0 0.0
      %623 = vmatpush.msra.mxu0 0.0
      %624 = vmatpush.msra.mxu0 0.0
      %625 = vmatpush.msra.mxu0 0.0
      %626 = vmatpush.msra.mxu0 0.0
      %627 = vmatpush.msra.mxu0 0.0
      %628 = vmatpush.msra.mxu0 0.0
      %629 = vmatpush.msra.mxu0 %v607
      %630 = vmatmul.f32.gmra.mxu0 %v612
      %v631 = vpop.f32.mrf.mxu0
      %v632 = vadd.f32 0.0, %v631
      %633 = vdwg.mxu0
      %634 = vmatpush.msra.mxu0 0.0
      %635 = vmatpush.msra.mxu0 0.0
      %636 = vmatpush.msra.mxu0 0.0
      %637 = vmatpush.msra.mxu0 0.0
      %638 = vmatpush.msra.mxu0 0.0
      %639 = vmatpush.msra.mxu0 0.0
      %640 = vmatpush.msra.mxu0 0.0
      %641 = vmatpush.msra.mxu0 0.0
      %642 = vmatpush.msra.mxu0 0.0
      %643 = vmatpush.msra.mxu0 0.0
      %644 = vmatpush.msra.mxu0 0.0
      %645 = vmatpush.msra.mxu0 0.0
      %646 = vmatpush.msra.mxu0 0.0
      %647 = vmatpush.msra.mxu0 0.0
      %648 = vmatpush.msra.mxu0 0.0
      %649 = vmatpush.msra.mxu0 %v608
      %650 = vmatmul.f32.gmra.mxu0 %v612
      %v651 = vpop.f32.mrf.mxu0
      %v652 = vadd.f32 0.0, %v651
      %653 = vdwg.mxu0
      %v654 = vadd.f32 %v581, %v632
      %v655 = vadd.f32 %v582, %v652
      %s656 = scalar_lea.vmem %s2, 32
      %v657 = vld [vmem:[%s656] sm:$0xff]
      %v659 = vsel %vm407, %v657, 0
      %661 = vmatpush.msra.mxu0 0.0
      %662 = vmatpush.msra.mxu0 0.0
      %663 = vmatpush.msra.mxu0 0.0
      %664 = vmatpush.msra.mxu0 0.0
      %665 = vmatpush.msra.mxu0 0.0
      %666 = vmatpush.msra.mxu0 0.0
      %667 = vmatpush.msra.mxu0 0.0
      %668 = vmatpush.msra.mxu0 0.0
      %669 = vmatpush.msra.mxu0 0.0
      %670 = vmatpush.msra.mxu0 0.0
      %671 = vmatpush.msra.mxu0 0.0
      %672 = vmatpush.msra.mxu0 0.0
      %673 = vmatpush.msra.mxu0 0.0
      %674 = vmatpush.msra.mxu0 0.0
      %675 = vmatpush.msra.mxu0 0.0
      %676 = vmatpush.msra.mxu0 %v374
      %677 = vmatmul.f32.gmra.mxu0 %v659
      %v678 = vpop.f32.mrf.mxu0
      %v679 = vadd.f32 0.0, %v678
      %680 = vdwg.mxu0
      %681 = vmatpush.msra.mxu0 0.0
      %682 = vmatpush.msra.mxu0 0.0
      %683 = vmatpush.msra.mxu0 0.0
      %684 = vmatpush.msra.mxu0 0.0
      %685 = vmatpush.msra.mxu0 0.0
      %686 = vmatpush.msra.mxu0 0.0
      %687 = vmatpush.msra.mxu0 0.0
      %688 = vmatpush.msra.mxu0 0.0
      %689 = vmatpush.msra.mxu0 0.0
      %690 = vmatpush.msra.mxu0 0.0
      %691 = vmatpush.msra.mxu0 0.0
      %692 = vmatpush.msra.mxu0 0.0
      %693 = vmatpush.msra.mxu0 0.0
      %694 = vmatpush.msra.mxu0 0.0
      %695 = vmatpush.msra.mxu0 0.0
      %696 = vmatpush.msra.mxu0 %v375
      %697 = vmatmul.f32.gmra.mxu0 %v659
      %v698 = vpop.f32.mrf.mxu0
      %v699 = vadd.f32 0.0, %v698
      %700 = vdwg.mxu0
      %v701 = vadd.f32 %v654, %v679
      %v702 = vadd.f32 %v655, %v699
      %v703 = vld [vmem:[#allocation2 + $0x8] sm:$0xff]
      %v704 = vld [vmem:[#allocation2 + $0x10] sm:$0xff]
      %v705 = vld [vmem:[#allocation2 + $0x18] sm:$0xff]
      %706 = vrot.lane.b32.xlu0 %v351, 1
      %v707 = vpop.permute.xlu0 %706
      %708 = vrot.lane.b32.xlu0 %v352, 1
      %v709 = vpop.permute.xlu0 %708
      %v710 = vsel %vm606, %v707, %v709
      %v714 = vmul.f32 %v703, %v707
      %v715 = vmul.f32 %v704, %v710
      %v716 = vmul.f32 %v705, %v709
      %s717 = scalar_lea.vmem %s2, 40
      %v718 = vld [vmem:[%s717] sm:$0xff]
      %722 = vrot.lane.b32.xlu0 %v714, 127
      %v723 = vpop.permute.xlu0 %722
      %724 = vrot.lane.b32.xlu0 %v715, 127
      %v725 = vpop.permute.xlu0 %724
      %726 = vrot.lane.b32.xlu0 %v716, 127
      %v727 = vpop.permute.xlu0 %726
      %v728 = vsel %vm587, %v723, %v725
      %v729 = vsel %vm587, %v725, %v727
      %v733 = vsel %vm407, %v718, 0
      %735 = vmatpush.msra.mxu0 0.0
      %736 = vmatpush.msra.mxu0 0.0
      %737 = vmatpush.msra.mxu0 0.0
      %738 = vmatpush.msra.mxu0 0.0
      %739 = vmatpush.msra.mxu0 0.0
      %740 = vmatpush.msra.mxu0 0.0
      %741 = vmatpush.msra.mxu0 0.0
      %742 = vmatpush.msra.mxu0 0.0
      %743 = vmatpush.msra.mxu0 0.0
      %744 = vmatpush.msra.mxu0 0.0
      %745 = vmatpush.msra.mxu0 0.0
      %746 = vmatpush.msra.mxu0 0.0
      %747 = vmatpush.msra.mxu0 0.0
      %748 = vmatpush.msra.mxu0 0.0
      %749 = vmatpush.msra.mxu0 0.0
      %750 = vmatpush.msra.mxu0 %v728
      %751 = vmatmul.f32.gmra.mxu0 %v733
      %v752 = vpop.f32.mrf.mxu0
      %v753 = vadd.f32 0.0, %v752
      %754 = vdwg.mxu0
      %755 = vmatpush.msra.mxu0 0.0
      %756 = vmatpush.msra.mxu0 0.0
      %757 = vmatpush.msra.mxu0 0.0
      %758 = vmatpush.msra.mxu0 0.0
      %759 = vmatpush.msra.mxu0 0.0
      %760 = vmatpush.msra.mxu0 0.0
      %761 = vmatpush.msra.mxu0 0.0
      %762 = vmatpush.msra.mxu0 0.0
      %763 = vmatpush.msra.mxu0 0.0
      %764 = vmatpush.msra.mxu0 0.0
      %765 = vmatpush.msra.mxu0 0.0
      %766 = vmatpush.msra.mxu0 0.0
      %767 = vmatpush.msra.mxu0 0.0
      %768 = vmatpush.msra.mxu0 0.0
      %769 = vmatpush.msra.mxu0 0.0
      %770 = vmatpush.msra.mxu0 %v729
      %771 = vmatmul.f32.gmra.mxu0 %v733
      %v772 = vpop.f32.mrf.mxu0
      %v773 = vadd.f32 0.0, %v772
      %774 = vdwg.mxu0
      %v775 = vadd.f32 %v701, %v753
      %v776 = vadd.f32 %v702, %v773
      %777 = vrot.lane.b32.xlu0 %v345, 15
      %v778 = vpop.permute.xlu0 %777
      %779 = vrot.lane.b32.xlu0 %v346, 15
      %v780 = vpop.permute.xlu0 %779
      %v781 = vsel %vm533, %v778, %v780
      %v785 = vmul.f32 %v703, %v778
      %v786 = vmul.f32 %v704, %v781
      %v787 = vmul.f32 %v705, %v780
      %s788 = scalar_lea.vmem %s2, 48
      %v789 = vld [vmem:[%s788] sm:$0xff]
      %793 = vrot.lane.b32.xlu0 %v785, 113
      %v794 = vpop.permute.xlu0 %793
      %795 = vrot.lane.b32.xlu0 %v786, 113
      %v796 = vpop.permute.xlu0 %795
      %797 = vrot.lane.b32.xlu0 %v787, 113
      %v798 = vpop.permute.xlu0 %797
      %v799 = vsel %vm514, %v794, %v796
      %v800 = vsel %vm514, %v796, %v798
      %v804 = vsel %vm407, %v789, 0
      %806 = vmatpush.msra.mxu0 0.0
      %807 = vmatpush.msra.mxu0 0.0
      %808 = vmatpush.msra.mxu0 0.0
      %809 = vmatpush.msra.mxu0 0.0
      %810 = vmatpush.msra.mxu0 0.0
      %811 = vmatpush.msra.mxu0 0.0
      %812 = vmatpush.msra.mxu0 0.0
      %813 = vmatpush.msra.mxu0 0.0
      %814 = vmatpush.msra.mxu0 0.0
      %815 = vmatpush.msra.mxu0 0.0
      %816 = vmatpush.msra.mxu0 0.0
      %817 = vmatpush.msra.mxu0 0.0
      %818 = vmatpush.msra.mxu0 0.0
      %819 = vmatpush.msra.mxu0 0.0
      %820 = vmatpush.msra.mxu0 0.0
      %821 = vmatpush.msra.mxu0 %v799
      %822 = vmatmul.f32.gmra.mxu0 %v804
      %v823 = vpop.f32.mrf.mxu0
      %v824 = vadd.f32 0.0, %v823
      %825 = vdwg.mxu0
      %826 = vmatpush.msra.mxu0 0.0
      %827 = vmatpush.msra.mxu0 0.0
      %828 = vmatpush.msra.mxu0 0.0
      %829 = vmatpush.msra.mxu0 0.0
      %830 = vmatpush.msra.mxu0 0.0
      %831 = vmatpush.msra.mxu0 0.0
      %832 = vmatpush.msra.mxu0 0.0
      %833 = vmatpush.msra.mxu0 0.0
      %834 = vmatpush.msra.mxu0 0.0
      %835 = vmatpush.msra.mxu0 0.0
      %836 = vmatpush.msra.mxu0 0.0
      %837 = vmatpush.msra.mxu0 0.0
      %838 = vmatpush.msra.mxu0 0.0
      %839 = vmatpush.msra.mxu0 0.0
      %840 = vmatpush.msra.mxu0 0.0
      %841 = vmatpush.msra.mxu0 %v800
      %842 = vmatmul.f32.gmra.mxu0 %v804
      %v843 = vpop.f32.mrf.mxu0
      %v844 = vadd.f32 0.0, %v843
      %845 = vdwg.mxu0
      %v846 = vadd.f32 %v775, %v824
      %v847 = vadd.f32 %v776, %v844
      %s848 = scalar_lea.vmem %s2, 56
      %v849 = vld [vmem:[%s848] sm:$0xff]
      %853 = vrot.lane.b32.xlu0 %v703, 112
      %v854 = vpop.permute.xlu0 %853
      %855 = vrot.lane.b32.xlu0 %v704, 112
      %v856 = vpop.permute.xlu0 %855
      %857 = vrot.lane.b32.xlu0 %v705, 112
      %v858 = vpop.permute.xlu0 %857
      %vm859 = vcmask 916480
      %v860 = vsel %vm859, %v854, %v856
      %v861 = vsel %vm859, %v856, %v858
      %v865 = vsel %vm407, %v849, 0
      %867 = vmatpush.msra.mxu0 0.0
      %868 = vmatpush.msra.mxu0 0.0
      %869 = vmatpush.msra.mxu0 0.0
      %870 = vmatpush.msra.mxu0 0.0
      %871 = vmatpush.msra.mxu0 0.0
      %872 = vmatpush.msra.mxu0 0.0
      %873 = vmatpush.msra.mxu0 0.0
      %874 = vmatpush.msra.mxu0 0.0
      %875 = vmatpush.msra.mxu0 0.0
      %876 = vmatpush.msra.mxu0 0.0
      %877 = vmatpush.msra.mxu0 0.0
      %878 = vmatpush.msra.mxu0 0.0
      %879 = vmatpush.msra.mxu0 0.0
      %880 = vmatpush.msra.mxu0 0.0
      %881 = vmatpush.msra.mxu0 0.0
      %882 = vmatpush.msra.mxu0 %v860
      %883 = vmatmul.f32.gmra.mxu0 %v865
      %v884 = vpop.f32.mrf.mxu0
      %v885 = vadd.f32 0.0, %v884
      %886 = vdwg.mxu0
      %887 = vmatpush.msra.mxu0 0.0
      %888 = vmatpush.msra.mxu0 0.0
      %889 = vmatpush.msra.mxu0 0.0
      %890 = vmatpush.msra.mxu0 0.0
      %891 = vmatpush.msra.mxu0 0.0
      %892 = vmatpush.msra.mxu0 0.0
      %893 = vmatpush.msra.mxu0 0.0
      %894 = vmatpush.msra.mxu0 0.0
      %895 = vmatpush.msra.mxu0 0.0
      %896 = vmatpush.msra.mxu0 0.0
      %897 = vmatpush.msra.mxu0 0.0
      %898 = vmatpush.msra.mxu0 0.0
      %899 = vmatpush.msra.mxu0 0.0
      %900 = vmatpush.msra.mxu0 0.0
      %901 = vmatpush.msra.mxu0 0.0
      %902 = vmatpush.msra.mxu0 %v861
      %903 = vmatmul.f32.gmra.mxu0 %v865
      %v904 = vpop.f32.mrf.mxu0
      %v905 = vadd.f32 0.0, %v904
      %906 = vdwg.mxu0
      %v907 = vadd.f32 %v846, %v885
      %v908 = vadd.f32 %v847, %v905
      %909 = vrot.lane.b32.xlu0 %v351, 17
      %v910 = vpop.permute.xlu0 %909
      %911 = vrot.lane.b32.xlu0 %v352, 17
      %v912 = vpop.permute.xlu0 %911
      %v913 = vsel %vm460, %v910, %v912
      %v917 = vmul.f32 %v703, %v910
      %v918 = vmul.f32 %v704, %v913
      %v919 = vmul.f32 %v705, %v912
      %s920 = scalar_lea.vmem %s2, 64
      %v921 = vld [vmem:[%s920] sm:$0xff]
      %925 = vrot.lane.b32.xlu0 %v917, 111
      %v926 = vpop.permute.xlu0 %925
      %927 = vrot.lane.b32.xlu0 %v918, 111
      %v928 = vpop.permute.xlu0 %927
      %929 = vrot.lane.b32.xlu0 %v919, 111
      %v930 = vpop.permute.xlu0 %929
      %v931 = vsel %vm382, %v926, %v928
      %v932 = vsel %vm382, %v928, %v930
      %v936 = vsel %vm407, %v921, 0
      %938 = vmatpush.msra.mxu0 0.0
      %939 = vmatpush.msra.mxu0 0.0
      %940 = vmatpush.msra.mxu0 0.0
      %941 = vmatpush.msra.mxu0 0.0
      %942 = vmatpush.msra.mxu0 0.0
      %943 = vmatpush.msra.mxu0 0.0
      %944 = vmatpush.msra.mxu0 0.0
      %945 = vmatpush.msra.mxu0 0.0
      %946 = vmatpush.msra.mxu0 0.0
      %947 = vmatpush.msra.mxu0 0.0
      %948 = vmatpush.msra.mxu0 0.0
      %949 = vmatpush.msra.mxu0 0.0
      %950 = vmatpush.msra.mxu0 0.0
      %951 = vmatpush.msra.mxu0 0.0
      %952 = vmatpush.msra.mxu0 0.0
      %953 = vmatpush.msra.mxu0 %v931
      %954 = vmatmul.f32.gmra.mxu0 %v936
      %v955 = vpop.f32.mrf.mxu0
      %v956 = vadd.f32 0.0, %v955
      %957 = vdwg.mxu0
      %958 = vmatpush.msra.mxu0 0.0
      %959 = vmatpush.msra.mxu0 0.0
      %960 = vmatpush.msra.mxu0 0.0
      %961 = vmatpush.msra.mxu0 0.0
      %962 = vmatpush.msra.mxu0 0.0
      %963 = vmatpush.msra.mxu0 0.0
      %964 = vmatpush.msra.mxu0 0.0
      %965 = vmatpush.msra.mxu0 0.0
      %966 = vmatpush.msra.mxu0 0.0
      %967 = vmatpush.msra.mxu0 0.0
      %968 = vmatpush.msra.mxu0 0.0
      %969 = vmatpush.msra.mxu0 0.0
      %970 = vmatpush.msra.mxu0 0.0
      %971 = vmatpush.msra.mxu0 0.0
      %972 = vmatpush.msra.mxu0 0.0
      %973 = vmatpush.msra.mxu0 %v932
      %974 = vmatmul.f32.gmra.mxu0 %v936
      %v975 = vpop.f32.mrf.mxu0
      %v976 = vadd.f32 0.0, %v975
      %977 = vdwg.mxu0
      %v978 = vadd.f32 %v907, %v956
      %v979 = vadd.f32 %v908, %v976
      %981 = vset.pattern.permute.xlu0 0
      %982 = vperm.xlu0 %981, %v372
      %v983 = vpop.permute.xlu0 %982
      %v985 = vadd.f32 %v978, %v983
      %v986 = vadd.f32 %v979, %v983
      %vm987 = vcmp.ge.f32.partialorder %v985, 0.0
      %vm988 = vcmp.ge.f32.partialorder %v986, 0.0
      %v989 = vmul.f32 %v985, 0.01
      %v990 = vmul.f32 %v986, 0.01
      %v991 = vsel %vm987, %v985, %v989
      %v992 = vsel %vm988, %v986, %v990
      %993 = vst [vmem:[#allocation2 + $0x8] sm:$0xff] %v991
      %994 = vst [vmem:[#allocation2 + $0x10] sm:$0xff] %v992
      %v995 = vld [vmem:[%s5] sm:$0xff]
      %v996 = vld [vmem:[#allocation2] sm:$0xff]
      %v997 = vld [vmem:[#allocation2 + $0x8] sm:$0xff]
      %v998 = vld [vmem:[#allocation2 + $0x10] sm:$0xff]
      %v999 = vmul.f32 %v996, %v379
      %v1000 = vmul.f32 %v997, %v383
      %v1001 = vmul.f32 %v998, %v381
      %v1002 = vld [vmem:[%s4] sm:$0xff]
      %s1003 = scalar_lea.vmem %s4, 8
      %v1004 = vld [vmem:[%s1003] sm:$0xff]
      %1008 = vrot.lane.b32.xlu0 %v996, 16
      %v1009 = vpop.permute.xlu0 %1008
      %1010 = vrot.lane.b32.xlu0 %v997, 16
      %v1011 = vpop.permute.xlu0 %1010
      %1012 = vrot.lane.b32.xlu0 %v998, 16
      %v1013 = vpop.permute.xlu0 %1012
      %v1014 = vsel %vm402, %v1009, %v1011
      %v1015 = vsel %vm402, %v1011, %v1013
      %v1019 = vsel %vm407, %v1004, 0
      %1021 = vmatpush.msra.mxu0 0.0
      %1022 = vmatpush.msra.mxu0 0.0
      %1023 = vmatpush.msra.mxu0 0.0
      %1024 = vmatpush.msra.mxu0 0.0
      %1025 = vmatpush.msra.mxu0 0.0
      %1026 = vmatpush.msra.mxu0 0.0
      %1027 = vmatpush.msra.mxu0 0.0
      %1028 = vmatpush.msra.mxu0 0.0
      %1029 = vmatpush.msra.mxu0 0.0
      %1030 = vmatpush.msra.mxu0 0.0
      %1031 = vmatpush.msra.mxu0 0.0
      %1032 = vmatpush.msra.mxu0 0.0
      %1033 = vmatpush.msra.mxu0 0.0
      %1034 = vmatpush.msra.mxu0 0.0
      %1035 = vmatpush.msra.mxu0 0.0
      %1036 = vmatpush.msra.mxu0 %v1014
      %1037 = vmatmul.f32.gmra.mxu0 %v1019
      %v1038 = vpop.f32.mrf.mxu0
      %v1039 = vadd.f32 0.0, %v1038
      %1040 = vdwg.mxu0
      %1041 = vmatpush.msra.mxu0 0.0
      %1042 = vmatpush.msra.mxu0 0.0
      %1043 = vmatpush.msra.mxu0 0.0
      %1044 = vmatpush.msra.mxu0 0.0
      %1045 = vmatpush.msra.mxu0 0.0
      %1046 = vmatpush.msra.mxu0 0.0
      %1047 = vmatpush.msra.mxu0 0.0
      %1048 = vmatpush.msra.mxu0 0.0
      %1049 = vmatpush.msra.mxu0 0.0
      %1050 = vmatpush.msra.mxu0 0.0
      %1051 = vmatpush.msra.mxu0 0.0
      %1052 = vmatpush.msra.mxu0 0.0
      %1053 = vmatpush.msra.mxu0 0.0
      %1054 = vmatpush.msra.mxu0 0.0
      %1055 = vmatpush.msra.mxu0 0.0
      %1056 = vmatpush.msra.mxu0 %v1015
      %1057 = vmatmul.f32.gmra.mxu0 %v1019
      %v1058 = vpop.f32.mrf.mxu0
      %v1059 = vadd.f32 0.0, %v1058
      %1060 = vdwg.mxu0
      %1064 = vrot.lane.b32.xlu0 %v999, 17
      %v1065 = vpop.permute.xlu0 %1064
      %1066 = vrot.lane.b32.xlu0 %v1000, 17
      %v1067 = vpop.permute.xlu0 %1066
      %1068 = vrot.lane.b32.xlu0 %v1001, 17
      %v1069 = vpop.permute.xlu0 %1068
      %v1070 = vsel %vm460, %v1065, %v1067
      %v1071 = vsel %vm460, %v1067, %v1069
      %v1075 = vsel %vm407, %v1002, 0
      %1077 = vmatpush.msra.mxu0 0.0
      %1078 = vmatpush.msra.mxu0 0.0
      %1079 = vmatpush.msra.mxu0 0.0
      %1080 = vmatpush.msra.mxu0 0.0
      %1081 = vmatpush.msra.mxu0 0.0
      %1082 = vmatpush.msra.mxu0 0.0
      %1083 = vmatpush.msra.mxu0 0.0
      %1084 = vmatpush.msra.mxu0 0.0
      %1085 = vmatpush.msra.mxu0 0.0
      %1086 = vmatpush.msra.mxu0 0.0
      %1087 = vmatpush.msra.mxu0 0.0
      %1088 = vmatpush.msra.mxu0 0.0
      %1089 = vmatpush.msra.mxu0 0.0
      %1090 = vmatpush.msra.mxu0 0.0
      %1091 = vmatpush.msra.mxu0 0.0
      %1092 = vmatpush.msra.mxu0 %v1070
      %1093 = vmatmul.f32.gmra.mxu0 %v1075
      %v1094 = vpop.f32.mrf.mxu0
      %v1095 = vadd.f32 %v1039, %v1094
      %1096 = vdwg.mxu0
      %1097 = vmatpush.msra.mxu0 0.0
      %1098 = vmatpush.msra.mxu0 0.0
      %1099 = vmatpush.msra.mxu0 0.0
      %1100 = vmatpush.msra.mxu0 0.0
      %1101 = vmatpush.msra.mxu0 0.0
      %1102 = vmatpush.msra.mxu0 0.0
      %1103 = vmatpush.msra.mxu0 0.0
      %1104 = vmatpush.msra.mxu0 0.0
      %1105 = vmatpush.msra.mxu0 0.0
      %1106 = vmatpush.msra.mxu0 0.0
      %1107 = vmatpush.msra.mxu0 0.0
      %1108 = vmatpush.msra.mxu0 0.0
      %1109 = vmatpush.msra.mxu0 0.0
      %1110 = vmatpush.msra.mxu0 0.0
      %1111 = vmatpush.msra.mxu0 0.0
      %1112 = vmatpush.msra.mxu0 %v1071
      %1113 = vmatmul.f32.gmra.mxu0 %v1075
      %v1114 = vpop.f32.mrf.mxu0
      %v1115 = vadd.f32 %v1059, %v1114
      %1116 = vdwg.mxu0
      %v1117 = vmul.f32 %v996, %v511
      %v1118 = vmul.f32 %v997, %v515
      %v1119 = vmul.f32 %v998, %v513
      %s1120 = scalar_lea.vmem %s4, 16
      %v1121 = vld [vmem:[%s1120] sm:$0xff]
      %1125 = vrot.lane.b32.xlu0 %v1117, 15
      %v1126 = vpop.permute.xlu0 %1125
      %1127 = vrot.lane.b32.xlu0 %v1118, 15
      %v1128 = vpop.permute.xlu0 %1127
      %1129 = vrot.lane.b32.xlu0 %v1119, 15
      %v1130 = vpop.permute.xlu0 %1129
      %v1131 = vsel %vm533, %v1126, %v1128
      %v1132 = vsel %vm533, %v1128, %v1130
      %v1136 = vsel %vm407, %v1121, 0
      %1138 = vmatpush.msra.mxu0 0.0
      %1139 = vmatpush.msra.mxu0 0.0
      %1140 = vmatpush.msra.mxu0 0.0
      %1141 = vmatpush.msra.mxu0 0.0
      %1142 = vmatpush.msra.mxu0 0.0
      %1143 = vmatpush.msra.mxu0 0.0
      %1144 = vmatpush.msra.mxu0 0.0
      %1145 = vmatpush.msra.mxu0 0.0
      %1146 = vmatpush.msra.mxu0 0.0
      %1147 = vmatpush.msra.mxu0 0.0
      %1148 = vmatpush.msra.mxu0 0.0
      %1149 = vmatpush.msra.mxu0 0.0
      %1150 = vmatpush.msra.mxu0 0.0
      %1151 = vmatpush.msra.mxu0 0.0
      %1152 = vmatpush.msra.mxu0 0.0
      %1153 = vmatpush.msra.mxu0 %v1131
      %1154 = vmatmul.f32.gmra.mxu0 %v1136
      %v1155 = vpop.f32.mrf.mxu0
      %v1156 = vadd.f32 0.0, %v1155
      %1157 = vdwg.mxu0
      %1158 = vmatpush.msra.mxu0 0.0
      %1159 = vmatpush.msra.mxu0 0.0
      %1160 = vmatpush.msra.mxu0 0.0
      %1161 = vmatpush.msra.mxu0 0.0
      %1162 = vmatpush.msra.mxu0 0.0
      %1163 = vmatpush.msra.mxu0 0.0
      %1164 = vmatpush.msra.mxu0 0.0
      %1165 = vmatpush.msra.mxu0 0.0
      %1166 = vmatpush.msra.mxu0 0.0
      %1167 = vmatpush.msra.mxu0 0.0
      %1168 = vmatpush.msra.mxu0 0.0
      %1169 = vmatpush.msra.mxu0 0.0
      %1170 = vmatpush.msra.mxu0 0.0
      %1171 = vmatpush.msra.mxu0 0.0
      %1172 = vmatpush.msra.mxu0 0.0
      %1173 = vmatpush.msra.mxu0 %v1132
      %1174 = vmatmul.f32.gmra.mxu0 %v1136
      %v1175 = vpop.f32.mrf.mxu0
      %v1176 = vadd.f32 0.0, %v1175
      %1177 = vdwg.mxu0
      %v1178 = vadd.f32 %v1095, %v1156
      %v1179 = vadd.f32 %v1115, %v1176
      %v1180 = vmul.f32 %v996, %v584
      %v1181 = vmul.f32 %v997, %v588
      %v1182 = vmul.f32 %v998, %v586
      %s1183 = scalar_lea.vmem %s4, 24
      %v1184 = vld [vmem:[%s1183] sm:$0xff]
      %1188 = vrot.lane.b32.xlu0 %v1180, 1
      %v1189 = vpop.permute.xlu0 %1188
      %1190 = vrot.lane.b32.xlu0 %v1181, 1
      %v1191 = vpop.permute.xlu0 %1190
      %1192 = vrot.lane.b32.xlu0 %v1182, 1
      %v1193 = vpop.permute.xlu0 %1192
      %v1194 = vsel %vm606, %v1189, %v1191
      %v1195 = vsel %vm606, %v1191, %v1193
      %v1199 = vsel %vm407, %v1184, 0
      %1201 = vmatpush.msra.mxu0 0.0
      %1202 = vmatpush.msra.mxu0 0.0
      %1203 = vmatpush.msra.mxu0 0.0
      %1204 = vmatpush.msra.mxu0 0.0
      %1205 = vmatpush.msra.mxu0 0.0
      %1206 = vmatpush.msra.mxu0 0.0
      %1207 = vmatpush.msra.mxu0 0.0
      %1208 = vmatpush.msra.mxu0 0.0
      %1209 = vmatpush.msra.mxu0 0.0
      %1210 = vmatpush.msra.mxu0 0.0
      %1211 = vmatpush.msra.mxu0 0.0
      %1212 = vmatpush.msra.mxu0 0.0
      %1213 = vmatpush.msra.mxu0 0.0
      %1214 = vmatpush.msra.mxu0 0.0
      %1215 = vmatpush.msra.mxu0 0.0
      %1216 = vmatpush.msra.mxu0 %v1194
      %1217 = vmatmul.f32.gmra.mxu0 %v1199
      %v1218 = vpop.f32.mrf.mxu0
      %v1219 = vadd.f32 0.0, %v1218
      %1220 = vdwg.mxu0
      %1221 = vmatpush.msra.mxu0 0.0
      %1222 = vmatpush.msra.mxu0 0.0
      %1223 = vmatpush.msra.mxu0 0.0
      %1224 = vmatpush.msra.mxu0 0.0
      %1225 = vmatpush.msra.mxu0 0.0
      %1226 = vmatpush.msra.mxu0 0.0
      %1227 = vmatpush.msra.mxu0 0.0
      %1228 = vmatpush.msra.mxu0 0.0
      %1229 = vmatpush.msra.mxu0 0.0
      %1230 = vmatpush.msra.mxu0 0.0
      %1231 = vmatpush.msra.mxu0 0.0
      %1232 = vmatpush.msra.mxu0 0.0
      %1233 = vmatpush.msra.mxu0 0.0
      %1234 = vmatpush.msra.mxu0 0.0
      %1235 = vmatpush.msra.mxu0 0.0
      %1236 = vmatpush.msra.mxu0 %v1195
      %1237 = vmatmul.f32.gmra.mxu0 %v1199
      %v1238 = vpop.f32.mrf.mxu0
      %v1239 = vadd.f32 0.0, %v1238
      %1240 = vdwg.mxu0
      %v1241 = vadd.f32 %v1178, %v1219
      %v1242 = vadd.f32 %v1179, %v1239
      %s1243 = scalar_lea.vmem %s4, 32
      %v1244 = vld [vmem:[%s1243] sm:$0xff]
      %v1246 = vsel %vm407, %v1244, 0
      %1248 = vmatpush.msra.mxu0 0.0
      %1249 = vmatpush.msra.mxu0 0.0
      %1250 = vmatpush.msra.mxu0 0.0
      %1251 = vmatpush.msra.mxu0 0.0
      %1252 = vmatpush.msra.mxu0 0.0
      %1253 = vmatpush.msra.mxu0 0.0
      %1254 = vmatpush.msra.mxu0 0.0
      %1255 = vmatpush.msra.mxu0 0.0
      %1256 = vmatpush.msra.mxu0 0.0
      %1257 = vmatpush.msra.mxu0 0.0
      %1258 = vmatpush.msra.mxu0 0.0
      %1259 = vmatpush.msra.mxu0 0.0
      %1260 = vmatpush.msra.mxu0 0.0
      %1261 = vmatpush.msra.mxu0 0.0
      %1262 = vmatpush.msra.mxu0 0.0
      %1263 = vmatpush.msra.mxu0 %v997
      %1264 = vmatmul.f32.gmra.mxu0 %v1246
      %v1265 = vpop.f32.mrf.mxu0
      %v1266 = vadd.f32 0.0, %v1265
      %1267 = vdwg.mxu0
      %1268 = vmatpush.msra.mxu0 0.0
      %1269 = vmatpush.msra.mxu0 0.0
      %1270 = vmatpush.msra.mxu0 0.0
      %1271 = vmatpush.msra.mxu0 0.0
      %1272 = vmatpush.msra.mxu0 0.0
      %1273 = vmatpush.msra.mxu0 0.0
      %1274 = vmatpush.msra.mxu0 0.0
      %1275 = vmatpush.msra.mxu0 0.0
      %1276 = vmatpush.msra.mxu0 0.0
      %1277 = vmatpush.msra.mxu0 0.0
      %1278 = vmatpush.msra.mxu0 0.0
      %1279 = vmatpush.msra.mxu0 0.0
      %1280 = vmatpush.msra.mxu0 0.0
      %1281 = vmatpush.msra.mxu0 0.0
      %1282 = vmatpush.msra.mxu0 0.0
      %1283 = vmatpush.msra.mxu0 %v998
      %1284 = vmatmul.f32.gmra.mxu0 %v1246
      %v1285 = vpop.f32.mrf.mxu0
      %v1286 = vadd.f32 0.0, %v1285
      %1287 = vdwg.mxu0
      %v1288 = vadd.f32 %v1241, %v1266
      %v1289 = vadd.f32 %v1242, %v1286
      %v1290 = vld [vmem:[#allocation2 + $0x8] sm:$0xff]
      %v1291 = vld [vmem:[#allocation2 + $0x10] sm:$0xff]
      %v1292 = vld [vmem:[#allocation2 + $0x18] sm:$0xff]
      %v1293 = vmul.f32 %v1290, %v707
      %v1294 = vmul.f32 %v1291, %v710
      %v1295 = vmul.f32 %v1292, %v709
      %s1296 = scalar_lea.vmem %s4, 40
      %v1297 = vld [vmem:[%s1296] sm:$0xff]
      %1301 = vrot.lane.b32.xlu0 %v1293, 127
      %v1302 = vpop.permute.xlu0 %1301
      %1303 = vrot.lane.b32.xlu0 %v1294, 127
      %v1304 = vpop.permute.xlu0 %1303
      %1305 = vrot.lane.b32.xlu0 %v1295, 127
      %v1306 = vpop.permute.xlu0 %1305
      %v1307 = vsel %vm587, %v1302, %v1304
      %v1308 = vsel %vm587, %v1304, %v1306
      %v1312 = vsel %vm407, %v1297, 0
      %1314 = vmatpush.msra.mxu0 0.0
      %1315 = vmatpush.msra.mxu0 0.0
      %1316 = vmatpush.msra.mxu0 0.0
      %1317 = vmatpush.msra.mxu0 0.0
      %1318 = vmatpush.msra.mxu0 0.0
      %1319 = vmatpush.msra.mxu0 0.0
      %1320 = vmatpush.msra.mxu0 0.0
      %1321 = vmatpush.msra.mxu0 0.0
      %1322 = vmatpush.msra.mxu0 0.0
      %1323 = vmatpush.msra.mxu0 0.0
      %1324 = vmatpush.msra.mxu0 0.0
      %1325 = vmatpush.msra.mxu0 0.0
      %1326 = vmatpush.msra.mxu0 0.0
      %1327 = vmatpush.msra.mxu0 0.0
      %1328 = vmatpush.msra.mxu0 0.0
      %1329 = vmatpush.msra.mxu0 %v1307
      %1330 = vmatmul.f32.gmra.mxu0 %v1312
      %v1331 = vpop.f32.mrf.mxu0
      %v1332 = vadd.f32 0.0, %v1331
      %1333 = vdwg.mxu0
      %1334 = vmatpush.msra.mxu0 0.0
      %1335 = vmatpush.msra.mxu0 0.0
      %1336 = vmatpush.msra.mxu0 0.0
      %1337 = vmatpush.msra.mxu0 0.0
      %1338 = vmatpush.msra.mxu0 0.0
      %1339 = vmatpush.msra.mxu0 0.0
      %1340 = vmatpush.msra.mxu0 0.0
      %1341 = vmatpush.msra.mxu0 0.0
      %1342 = vmatpush.msra.mxu0 0.0
      %1343 = vmatpush.msra.mxu0 0.0
      %1344 = vmatpush.msra.mxu0 0.0
      %1345 = vmatpush.msra.mxu0 0.0
      %1346 = vmatpush.msra.mxu0 0.0
      %1347 = vmatpush.msra.mxu0 0.0
      %1348 = vmatpush.msra.mxu0 0.0
      %1349 = vmatpush.msra.mxu0 %v1308
      %1350 = vmatmul.f32.gmra.mxu0 %v1312
      %v1351 = vpop.f32.mrf.mxu0
      %v1352 = vadd.f32 0.0, %v1351
      %1353 = vdwg.mxu0
      %v1354 = vadd.f32 %v1288, %v1332
      %v1355 = vadd.f32 %v1289, %v1352
      %v1356 = vmul.f32 %v1290, %v778
      %v1357 = vmul.f32 %v1291, %v781
      %v1358 = vmul.f32 %v1292, %v780
      %s1359 = scalar_lea.vmem %s4, 48
      %v1360 = vld [vmem:[%s1359] sm:$0xff]
      %1364 = vrot.lane.b32.xlu0 %v1356, 113
      %v1365 = vpop.permute.xlu0 %1364
      %1366 = vrot.lane.b32.xlu0 %v1357, 113
      %v1367 = vpop.permute.xlu0 %1366
      %1368 = vrot.lane.b32.xlu0 %v1358, 113
      %v1369 = vpop.permute.xlu0 %1368
      %v1370 = vsel %vm514, %v1365, %v1367
      %v1371 = vsel %vm514, %v1367, %v1369
      %v1375 = vsel %vm407, %v1360, 0
      %1377 = vmatpush.msra.mxu0 0.0
      %1378 = vmatpush.msra.mxu0 0.0
      %1379 = vmatpush.msra.mxu0 0.0
      %1380 = vmatpush.msra.mxu0 0.0
      %1381 = vmatpush.msra.mxu0 0.0
      %1382 = vmatpush.msra.mxu0 0.0
      %1383 = vmatpush.msra.mxu0 0.0
      %1384 = vmatpush.msra.mxu0 0.0
      %1385 = vmatpush.msra.mxu0 0.0
      %1386 = vmatpush.msra.mxu0 0.0
      %1387 = vmatpush.msra.mxu0 0.0
      %1388 = vmatpush.msra.mxu0 0.0
      %1389 = vmatpush.msra.mxu0 0.0
      %1390 = vmatpush.msra.mxu0 0.0
      %1391 = vmatpush.msra.mxu0 0.0
      %1392 = vmatpush.msra.mxu0 %v1370
      %1393 = vmatmul.f32.gmra.mxu0 %v1375
      %v1394 = vpop.f32.mrf.mxu0
      %v1395 = vadd.f32 0.0, %v1394
      %1396 = vdwg.mxu0
      %1397 = vmatpush.msra.mxu0 0.0
      %1398 = vmatpush.msra.mxu0 0.0
      %1399 = vmatpush.msra.mxu0 0.0
      %1400 = vmatpush.msra.mxu0 0.0
      %1401 = vmatpush.msra.mxu0 0.0
      %1402 = vmatpush.msra.mxu0 0.0
      %1403 = vmatpush.msra.mxu0 0.0
      %1404 = vmatpush.msra.mxu0 0.0
      %1405 = vmatpush.msra.mxu0 0.0
      %1406 = vmatpush.msra.mxu0 0.0
      %1407 = vmatpush.msra.mxu0 0.0
      %1408 = vmatpush.msra.mxu0 0.0
      %1409 = vmatpush.msra.mxu0 0.0
      %1410 = vmatpush.msra.mxu0 0.0
      %1411 = vmatpush.msra.mxu0 0.0
      %1412 = vmatpush.msra.mxu0 %v1371
      %1413 = vmatmul.f32.gmra.mxu0 %v1375
      %v1414 = vpop.f32.mrf.mxu0
      %v1415 = vadd.f32 0.0, %v1414
      %1416 = vdwg.mxu0
      %v1417 = vadd.f32 %v1354, %v1395
      %v1418 = vadd.f32 %v1355, %v1415
      %s1419 = scalar_lea.vmem %s4, 56
      %v1420 = vld [vmem:[%s1419] sm:$0xff]
      %1424 = vrot.lane.b32.xlu0 %v1290, 112
      %v1425 = vpop.permute.xlu0 %1424
      %1426 = vrot.lane.b32.xlu0 %v1291, 112
      %v1427 = vpop.permute.xlu0 %1426
      %1428 = vrot.lane.b32.xlu0 %v1292, 112
      %v1429 = vpop.permute.xlu0 %1428
      %v1430 = vsel %vm859, %v1425, %v1427
      %v1431 = vsel %vm859, %v1427, %v1429
      %v1435 = vsel %vm407, %v1420, 0
      %1437 = vmatpush.msra.mxu0 0.0
      %1438 = vmatpush.msra.mxu0 0.0
      %1439 = vmatpush.msra.mxu0 0.0
      %1440 = vmatpush.msra.mxu0 0.0
      %1441 = vmatpush.msra.mxu0 0.0
      %1442 = vmatpush.msra.mxu0 0.0
      %1443 = vmatpush.msra.mxu0 0.0
      %1444 = vmatpush.msra.mxu0 0.0
      %1445 = vmatpush.msra.mxu0 0.0
      %1446 = vmatpush.msra.mxu0 0.0
      %1447 = vmatpush.msra.mxu0 0.0
      %1448 = vmatpush.msra.mxu0 0.0
      %1449 = vmatpush.msra.mxu0 0.0
      %1450 = vmatpush.msra.mxu0 0.0
      %1451 = vmatpush.msra.mxu0 0.0
      %1452 = vmatpush.msra.mxu0 %v1430
      %1453 = vmatmul.f32.gmra.mxu0 %v1435
      %v1454 = vpop.f32.mrf.mxu0
      %v1455 = vadd.f32 0.0, %v1454
      %1456 = vdwg.mxu0
      %1457 = vmatpush.msra.mxu0 0.0
      %1458 = vmatpush.msra.mxu0 0.0
      %1459 = vmatpush.msra.mxu0 0.0
      %1460 = vmatpush.msra.mxu0 0.0
      %1461 = vmatpush.msra.mxu0 0.0
      %1462 = vmatpush.msra.mxu0 0.0
      %1463 = vmatpush.msra.mxu0 0.0
      %1464 = vmatpush.msra.mxu0 0.0
      %1465 = vmatpush.msra.mxu0 0.0
      %1466 = vmatpush.msra.mxu0 0.0
      %1467 = vmatpush.msra.mxu0 0.0
      %1468 = vmatpush.msra.mxu0 0.0
      %1469 = vmatpush.msra.mxu0 0.0
      %1470 = vmatpush.msra.mxu0 0.0
      %1471 = vmatpush.msra.mxu0 0.0
      %1472 = vmatpush.msra.mxu0 %v1431
      %1473 = vmatmul.f32.gmra.mxu0 %v1435
      %v1474 = vpop.f32.mrf.mxu0
      %v1475 = vadd.f32 0.0, %v1474
      %1476 = vdwg.mxu0
      %v1477 = vadd.f32 %v1417, %v1455
      %v1478 = vadd.f32 %v1418, %v1475
      %v1479 = vmul.f32 %v1290, %v910
      %v1480 = vmul.f32 %v1291, %v913
      %v1481 = vmul.f32 %v1292, %v912
      %s1482 = scalar_lea.vmem %s4, 64
      %v1483 = vld [vmem:[%s1482] sm:$0xff]
      %1487 = vrot.lane.b32.xlu0 %v1479, 111
      %v1488 = vpop.permute.xlu0 %1487
      %1489 = vrot.lane.b32.xlu0 %v1480, 111
      %v1490 = vpop.permute.xlu0 %1489
      %1491 = vrot.lane.b32.xlu0 %v1481, 111
      %v1492 = vpop.permute.xlu0 %1491
      %v1493 = vsel %vm382, %v1488, %v1490
      %v1494 = vsel %vm382, %v1490, %v1492
      %v1498 = vsel %vm407, %v1483, 0
      %1500 = vmatpush.msra.mxu0 0.0
      %1501 = vmatpush.msra.mxu0 0.0
      %1502 = vmatpush.msra.mxu0 0.0
      %1503 = vmatpush.msra.mxu0 0.0
      %1504 = vmatpush.msra.mxu0 0.0
      %1505 = vmatpush.msra.mxu0 0.0
      %1506 = vmatpush.msra.mxu0 0.0
      %1507 = vmatpush.msra.mxu0 0.0
      %1508 = vmatpush.msra.mxu0 0.0
      %1509 = vmatpush.msra.mxu0 0.0
      %1510 = vmatpush.msra.mxu0 0.0
      %1511 = vmatpush.msra.mxu0 0.0
      %1512 = vmatpush.msra.mxu0 0.0
      %1513 = vmatpush.msra.mxu0 0.0
      %1514 = vmatpush.msra.mxu0 0.0
      %1515 = vmatpush.msra.mxu0 %v1493
      %1516 = vmatmul.f32.gmra.mxu0 %v1498
      %v1517 = vpop.f32.mrf.mxu0
      %v1518 = vadd.f32 0.0, %v1517
      %1519 = vdwg.mxu0
      %1520 = vmatpush.msra.mxu0 0.0
      %1521 = vmatpush.msra.mxu0 0.0
      %1522 = vmatpush.msra.mxu0 0.0
      %1523 = vmatpush.msra.mxu0 0.0
      %1524 = vmatpush.msra.mxu0 0.0
      %1525 = vmatpush.msra.mxu0 0.0
      %1526 = vmatpush.msra.mxu0 0.0
      %1527 = vmatpush.msra.mxu0 0.0
      %1528 = vmatpush.msra.mxu0 0.0
      %1529 = vmatpush.msra.mxu0 0.0
      %1530 = vmatpush.msra.mxu0 0.0
      %1531 = vmatpush.msra.mxu0 0.0
      %1532 = vmatpush.msra.mxu0 0.0
      %1533 = vmatpush.msra.mxu0 0.0
      %1534 = vmatpush.msra.mxu0 0.0
      %1535 = vmatpush.msra.mxu0 %v1494
      %1536 = vmatmul.f32.gmra.mxu0 %v1498
      %v1537 = vpop.f32.mrf.mxu0
      %v1538 = vadd.f32 0.0, %v1537
      %1539 = vdwg.mxu0
      %v1540 = vadd.f32 %v1477, %v1518
      %v1541 = vadd.f32 %v1478, %v1538
      %1543 = vset.pattern.permute.xlu0 0
      %1544 = vperm.xlu0 %1543, %v995
      %v1545 = vpop.permute.xlu0 %1544
      %v1547 = vadd.f32 %v1540, %v1545
      %v1548 = vadd.f32 %v1541, %v1545
      %v1551 = vrot.slane %v1548, 4
      %vm1552 = vcmask 1043456
      %v1553 = vsel %vm1552, %v1547, %v1551
      %1555 = vst [vmem:[%s306] sm:$0xff] %v1553
      %1556 = vst.sshfl [vmem:[#allocation1] sm:$0xff pattern:$0x75316420] %v1547
      %1557 = vst.sshfl [vmem:[#allocation1 + $0x8] sm:$0xff pattern:$0x75316420] %v1548
      %s1558 = scalar_lea.vmem [#allocation1], 1
      %v1559 = vld [vmem:[%s1558] ss:$2 sm:$0xff]
      %1561 = vst [vmem:[%s311] sm:$0xff] %v1559
      %p1562 = scmp.lt.s32.totalorder %s19, 1
      %s1563 = scalar_select %p1562, %s19, 1
      %s1564 = smul.addr %s1563, 2
      %s1565 = smul.addr %s1564, 4
      %s1566 = scalar_lea.vmem %s6, %s1565
      %p1567 = scmp.lt.s32.totalorder %s19, 1
      %s1568 = scalar_select %p1567, %s19, 1
      %s1569 = smul.addr %s1568, 2
      %s1570 = smul.addr %s1569, 4
      %s1571 = scalar_lea.vmem %s7, %s1570
      // Predicated region
      $region45: #{resblock_forward.1} parent=43 // pred_check
        %p1572 = pneg %p173
      $region46: #{resblock_forward.1} parent=43 // pred_check_branch
        %1574 = sbr.rel (%p1572) target = $region48
      $region47: #{resblock_forward.1} parent=43 // pred_region
        _
      $region48: #{resblock_forward.1} parent=43 // pred_fallthru
        _
      // Predicated region
      $region49: #{resblock_forward.1} parent=43 // pred_check
        %p1575 = pneg %p199
      $region50: #{resblock_forward.1} parent=43 // pred_check_branch
        %1577 = sbr.rel (%p1575) target = $region52
      $region51: #{resblock_forward.1} parent=43 // pred_region
        _
      $region52: #{resblock_forward.1} parent=43 // pred_fallthru
        _
    $region44: #{resblock_forward.1} parent=5 // pred_fallthru
      _
    %p1578 = scmp.le.s32.totalorder 2, %s14
    // Predicated region
    $region53: #{resblock_forward.1} parent=5 // pred_check
      %p1579 = pneg %p1578
    $region54: #{resblock_forward.1} parent=5 // pred_check_branch
      %1581 = sbr.rel (%p1579) target = $region56
    $region55: #{resblock_forward.1} parent=5 // pred_region
      %s1582 = ssub.s32 %s14, 2
      // Predicated region
      $region57: #{resblock_forward.1} parent=55 // pred_check
        %p1583 = pneg %p179
      $region58: #{resblock_forward.1} parent=55 // pred_check_branch
        %1585 = sbr.rel (%p1583) target = $region60
      $region59: #{resblock_forward.1} parent=55 // pred_region
        %p1586 = scmp.lt.s32.totalorder %s20, 1
        %s1587 = scalar_select %p1586, %s20, 1
        %s1588 = smul.addr %s1587, 2
        %s1589 = smul.addr %s1588, 4
        %s1590 = scalar_lea.vmem %s6, %s1589
      $region60: #{resblock_forward.1} parent=55 // pred_fallthru
        _
      // Predicated region
      $region61: #{resblock_forward.1} parent=55 // pred_check
        %p1591 = pneg %p205
      $region62: #{resblock_forward.1} parent=55 // pred_check_branch
        %1593 = sbr.rel (%p1591) target = $region64
      $region63: #{resblock_forward.1} parent=55 // pred_region
        %p1594 = scmp.lt.s32.totalorder %s20, 1
        %s1595 = scalar_select %p1594, %s20, 1
        %s1596 = smul.addr %s1595, 2
        %s1597 = smul.addr %s1596, 4
        %s1598 = scalar_lea.vmem %s7, %s1597
      $region64: #{resblock_forward.1} parent=55 // pred_fallthru
        _
    $region56: #{resblock_forward.1} parent=5 // pred_fallthru
      _
  $region6: #{resblock_forward.1} parent=0 // loop_footer
    %s18 = sadd.s32 1, %s14
  $region7: #{resblock_forward.1} parent=0 // loop_footer_branch
    %13 = sbr.rel target = $region3
  $region8: #{resblock_forward.1} parent=0 // loop_exit
    _

</llo_original>
